<compile_context>
chip_gen: v5e
topology: v5e:2x2
jax: 0.10.0
libtpu: 0.0.40
codegen_flags: <defaults>
</compile_context>

<pallas_src>
import functools

import numpy as np

import jax
import jax.numpy as jnp
from jax.experimental import pallas as pl
from jax.experimental.pallas import tpu as pltpu


# ----------------------------------------------------------------------------
# Kernel
# ----------------------------------------------------------------------------
def _conv3x3_matmuls(x3, w_ref, H, W):
    """3x3 'same' conv as 9 accumulated MXU matmuls, no im2col buffer.

    x3   : (H, W, cin) bf16 activation.
    w_ref: (9*cin, cout) bf16 weight ref, rows tap-major: (dy*3+dx)*cin + ci.
    Returns (H*W, cout) f32 (bias not added).
    """
    cin = x3.shape[-1]
    cout = w_ref.shape[-1]

    # dx = -1 / 0 / +1 column-shifted LHS operands (zero-filled edge column).
    zcol = jnp.zeros((H, 1, cin), x3.dtype)
    lhs = (
        jnp.concatenate([zcol, x3[:, :W - 1, :]], axis=1).reshape(H * W, cin),
        x3.reshape(H * W, cin),
        jnp.concatenate([x3[:, 1:, :], zcol], axis=1).reshape(H * W, cin),
    )

    # s[dy][i*W + j] = sum_dx x[i, j + dx - 1] @ w[dy, dx]   (f32 accumulation)
    s = []
    for dy in range(3):
        acc = None
        for dx in range(3):
            t = dy * 3 + dx
            w_tap = w_ref[t * cin:(t + 1) * cin, :]            # static, aligned
            part = jnp.dot(lhs[dx], w_tap, preferred_element_type=jnp.float32)
            acc = part if acc is None else acc + part
        s.append(acc)

    # y[i] = s0[i-1] + s1[i] + s2[i+1]  -> +/- W-row shifts in the flat
    # (H*W, cout) domain (sublane-group aligned whenever W % 8 == 0).
    zrow = jnp.zeros((W, cout), jnp.float32)
    return (s[1]
            + jnp.concatenate([zrow, s[0][:(H - 1) * W]], axis=0)
            + jnp.concatenate([s[2][W:], zrow], axis=0))


def _upscale_fused_kernel(x_ref, w1_ref, b1_ref, w2_ref, b2_ref, o_ref, *,
                          H, W, slope):
    """Fused UPSCALE forward for one frame, entirely in the low-res domain.

    x_ref : (1, H, W, Cin)  f32 input tile (cast to bf16 in-register)
    w1_ref: (9*Cin, 48)     bf16, conv1 taps, tap-major rows
    b1_ref: (1, 48)         f32
    w2_ref: (9*48, 48)      bf16, conv2 folded into the pre-shuffle domain
    b2_ref: (1, 48)         f32
    o_ref : (1, H*W, 48)    f32, natural matmul layout; channel
                            k = c*16 + r*8 + s*4 + p*2 + q (see epilogue)
    """
    cmid = w1_ref.shape[-1]                                    # 48

    x3 = x_ref[0].astype(jnp.bfloat16)                         # (H, W, Cin)

    # conv1 (Cin -> 48) + bias + LeakyReLU, f32 accumulation.
    y1 = _conv3x3_matmuls(x3, w1_ref, H, W) + b1_ref[...]      # (H*W, 48) f32
    y1 = jnp.where(y1 >= 0.0, y1, slope * y1)

    # conv2 folded into the 48-channel pre-shuffle domain.
    # bf16 intermediate is intentional (PyTorch chain is f32 end-to-end).
    z3 = y1.astype(jnp.bfloat16).reshape(H, W, cmid)
    y2 = _conv3x3_matmuls(z3, w2_ref, H, W) + b2_ref[...]      # (H*W, 48) f32

    o_ref[...] = y2[None].astype(o_ref.dtype)


# ----------------------------------------------------------------------------
# Host-side one-time weight preparation (hoisted out of the jit path)
# ----------------------------------------------------------------------------
def _fold_conv2_into_preshuffle_np(w2, b2):
    """Fold PixelShuffle(2) -> Conv2d(12,12,3x3,pad1) into an equivalent 3x3
    conv on the 48-channel pre-shuffle tensor (host-side NumPy, run once).

    w2: (3, 3, 12, 12) HWIO, b2: (12,)
    Returns w_eff: (3, 3, 48, 48) HWIO (in-ch = 4c'+2pp+qq, out-ch = 4o+2p+q),
            b_eff: (48,).
    NOTE: relies on Python floor semantics for negative ty/tx
          (ty = -1 -> sy = -1, pp = 1), which is the correct padding mapping.
    """
    w2 = np.asarray(w2, np.float32)
    b2 = np.asarray(b2, np.float32)
    w_eff = np.zeros((3, 3, 48, 48), np.float32)
    for p in range(2):              # output sub-pixel phase (rows)
        for q in range(2):          # output sub-pixel phase (cols)
            for dy in range(3):
                ty = p + dy - 1
                pp, sy = ty % 2, ty // 2      # input phase / low-res row shift
                for dx in range(3):
                    tx = q + dx - 1
                    qq, sx = tx % 2, tx // 2
                    w_eff[sy + 1, sx + 1, pp * 2 + qq::4, p * 2 + q::4] += \
                        w2[dy, dx]
    b_eff = np.repeat(b2, 4)
    return w_eff, b_eff


def prepare_params(params):
    """One-time host-side prep: fold conv2, flatten taps, cast weights."""
    w1 = np.asarray(params["w1"], np.float32)          # (3,3,Cin,48) HWIO
    b1 = np.asarray(params["b1"], np.float32)          # (48,)
    cin = w1.shape[2]
    w2e, b2e = _fold_conv2_into_preshuffle_np(params["w2"], params["b2"])
    return {
        "w1r": jnp.asarray(w1.reshape(9 * cin, 48), jnp.bfloat16),
        "b1r": jnp.asarray(b1.reshape(1, 48), jnp.float32),
        "w2r": jnp.asarray(w2e.reshape(9 * 48, 48), jnp.bfloat16),
        "b2r": jnp.asarray(b2e.reshape(1, 48), jnp.float32),
    }


def _vmem_limit_bytes():
    """Scoped-VMEM request: ~half of physical VMEM, clamped to [32, 96] MiB."""
    try:
        cap = pltpu.get_tpu_info().vmem_capacity_bytes
    except Exception:
        cap = 128 * 1024 * 1024
    return int(min(96 * 1024 * 1024, max(32 * 1024 * 1024, cap // 2)))


# ----------------------------------------------------------------------------
# Forward
# ----------------------------------------------------------------------------
@jax.jit
def upscale_forward(x_nchw, prep):
    """UPSCALE.forward.  x: (N, 64, H, W) f32 -> (N, 3, 4H, 4W) f32."""
    x = jnp.transpose(x_nchw, (0, 2, 3, 1))                    # NCHW -> NHWC f32
    N, H, W, Cin = x.shape
    cmid = prep["w1r"].shape[-1]                               # 48

    kernel = functools.partial(_upscale_fused_kernel, H=H, W=W, slope=0.2)

    # TODO(synk): for production frame sizes add row-strip tiling with a 1-row
    # halo (grid=(N, cdiv(H, TH))) so per-step VMEM stays within v7x's 64 MiB
    # and both TensorCores get many parallel steps; at demo sizes one frame per
    # grid step is tiny, so whole-frame blocks are used.
    zflat = pl.pallas_call(
        kernel,
        out_shape=jax.ShapeDtypeStruct((N, H * W, cmid), jnp.float32),
        grid=(N,),
        in_specs=[
            pl.BlockSpec((1, H, W, Cin), lambda n: (n, 0, 0, 0)),
            pl.BlockSpec((9 * Cin, cmid), lambda n: (0, 0)),
            pl.BlockSpec((1, cmid), lambda n: (0, 0)),
            pl.BlockSpec((9 * cmid, cmid), lambda n: (0, 0)),
            pl.BlockSpec((1, cmid), lambda n: (0, 0)),
        ],
        out_specs=pl.BlockSpec((1, H * W, cmid), lambda n: (n, 0, 0)),
        compiler_params=pltpu.CompilerParams(
            dimension_semantics=("parallel",),
            vmem_limit_bytes=_vmem_limit_bytes(),
        ),
    )(x, prep["w1r"], prep["b1r"], prep["w2r"], prep["b2r"])

    # Single 4x pixel shuffle, pure layout: channel k = c*16 + r*8 + s*4 + p*2 + q
    # lands at out[n, c, 4i + 2p + r, 4j + 2q + s].  (NCHW kept for fidelity to
    # the PyTorch module; drop the final transpose if downstream takes NHWC.)
    z = zflat.reshape(N, H, W, 3, 2, 2, 2, 2)          # (n, i, j, c, r, s, p, q)
    out = jnp.transpose(z, (0, 3, 1, 6, 4, 2, 7, 5))   # (n, c, i, p, r, j, q, s)
    return out.reshape(N, 3, 4 * H, 4 * W)


# ----------------------------------------------------------------------------
# Parameters + pure-JAX reference
# ----------------------------------------------------------------------------
def init_params(key, basic_feature=64):
    """Deterministic synthetic parameters (HWIO conv weights)."""
    k1, k2, k3, k4 = jax.random.split(key, 4)
    return {
        "w1": jax.random.normal(k1, (3, 3, basic_feature, 48), jnp.float32) * 0.05,
        "b1": jax.random.normal(k2, (48,), jnp.float32) * 0.05,
        "w2": jax.random.normal(k3, (3, 3, 12, 12), jnp.float32) * 0.05,
        "b2": jax.random.normal(k4, (12,), jnp.float32) * 0.05,
    }


def _pixel_shuffle_nhwc(x, r):
    N, H, W, C = x.shape
    co = C // (r * r)
    x = x.reshape(N, H, W, co, r, r)
    x = jnp.transpose(x, (0, 1, 4, 2, 5, 3))
    return x.reshape(N, H * r, W * r, co)


@jax.jit
def _ref_forward(x_nchw, params):
    """Pure-JAX f32 reference of the original PyTorch module."""
    x = jnp.transpose(x_nchw, (0, 2, 3, 1))
    dn = ("NHWC", "HWIO", "NHWC")
    y = jax.lax.conv_general_dilated(x, params["w1"], (1, 1), "SAME",
                                     dimension_numbers=dn) + params["b1"]
    y = jnp.where(y >= 0.0, y, 0.2 * y)
    y = _pixel_shuffle_nhwc(y, 2)
    y = jax.lax.conv_general_dilated(y, params["w2"], (1, 1), "SAME",
                                     dimension_numbers=dn) + params["b2"]
    y = _pixel_shuffle_nhwc(y, 2)
    return jnp.transpose(y, (0, 3, 1, 2))


if __name__ == "__main__":
    key = jax.random.PRNGKey(0)
    k_x, k_p, k_x2 = jax.random.split(key, 3)

    params = init_params(k_p, basic_feature=64)
    prep = prepare_params(params)   # one-time host-side weight prep

    # Primary demo shape (non-square: exercises distinct row/col phases).
    N, C, H, W = 2, 64, 8, 16
    x = jax.random.normal(k_x, (N, C, H, W), jnp.float32)
    out = upscale_forward(x, prep)
    jax.block_until_ready(out)
    assert out.shape == (N, 3, 4 * H, 4 * W), out.shape

    ref = _ref_forward(x, params)
    rel = jnp.linalg.norm(out - ref) / (jnp.linalg.norm(ref) + 1e-8)
    assert float(rel) < 5e-2, float(rel)   # tolerance driven by bf16 MXU inputs

    # Second, differently-shaped check (H not a multiple of 8, W != H) to pin
    # down the subpixel-phase indexing of the conv2 fold at another size.
    N2, H2, W2 = 1, 12, 24
    x2 = jax.random.normal(k_x2, (N2, C, H2, W2), jnp.float32)
    out2 = upscale_forward(x2, prep)
    jax.block_until_ready(out2)
    assert out2.shape == (N2, 3, 4 * H2, 4 * W2), out2.shape
    ref2 = _ref_forward(x2, params)
    rel2 = jnp.linalg.norm(out2 - ref2) / (jnp.linalg.norm(ref2) + 1e-8)
    assert float(rel2) < 5e-2, float(rel2)

    print("KERNEL_OK")
</pallas_src>

<mosaic_0001>
module attributes {stable_mosaic.version = 11 : i64} {
  func.func @_upscale_fused_kernel(%arg0: i32, %arg1: memref<1x8x16x64xf32, #tpu.memory_space<vmem>>, %arg2: memref<576x48xbf16, #tpu.memory_space<vmem>>, %arg3: memref<1x48xf32, #tpu.memory_space<vmem>>, %arg4: memref<432x48xbf16, #tpu.memory_space<vmem>>, %arg5: memref<1x48xf32, #tpu.memory_space<vmem>>, %arg6: memref<1x128x48xf32, #tpu.memory_space<vmem>>) attributes {dimension_semantics = [#tpu.dimension_semantics<parallel>], iteration_bounds = array<i64: 2>, scalar_prefetch = 0 : i64, scratch_operands = 0 : i64, tpu.core_type = #tpu.core_type<tc>, window_params = [{transform_indices = @transform_0, window_bounds = array<i64: 1, 8, 16, 64>}, {pipeline_mode = #tpu.pipeline_mode<synchronous>, transform_indices = @transform_1, window_bounds = array<i64: 576, 48>}, {pipeline_mode = #tpu.pipeline_mode<synchronous>, transform_indices = @transform_2, window_bounds = array<i64: 1, 48>}, {pipeline_mode = #tpu.pipeline_mode<synchronous>, transform_indices = @transform_3, window_bounds = array<i64: 432, 48>}, {pipeline_mode = #tpu.pipeline_mode<synchronous>, transform_indices = @transform_4, window_bounds = array<i64: 1, 48>}, {transform_indices = @transform_5, window_bounds = array<i64: 1, 128, 48>}]} {
    %c0 = arith.constant 0 : index
    %c0_0 = arith.constant 0 : index
    %c0_1 = arith.constant 0 : index
    %c0_2 = arith.constant 0 : index
    %0 = vector.load %arg1[%c0, %c0_0, %c0_1, %c0_2] : memref<1x8x16x64xf32, #tpu.memory_space<vmem>>, vector<1x8x16x64xf32>
    %1 = vector.shape_cast %0 : vector<1x8x16x64xf32> to vector<8x16x64xf32>
    %2 = arith.truncf %1 : vector<8x16x64xf32> to vector<8x16x64xbf16>
    %cst = arith.constant 0.000000e+00 : bf16
    %3 = vector.broadcast %cst : bf16 to vector<8x1x64xbf16>
    %4 = vector.extract_strided_slice %2 {offsets = [0, 0, 0], sizes = [8, 15, 64], strides = [1, 1, 1]} : vector<8x16x64xbf16> to vector<8x15x64xbf16>
    %5 = tpu.concatenate %3, %4 in 1 : vector<8x1x64xbf16>, vector<8x15x64xbf16> -> vector<8x16x64xbf16>
    %6 = vector.shape_cast %5 : vector<8x16x64xbf16> to vector<128x64xbf16>
    %7 = vector.shape_cast %2 : vector<8x16x64xbf16> to vector<128x64xbf16>
    %8 = vector.extract_strided_slice %2 {offsets = [0, 1, 0], sizes = [8, 15, 64], strides = [1, 1, 1]} : vector<8x16x64xbf16> to vector<8x15x64xbf16>
    %9 = tpu.concatenate %8, %3 in 1 : vector<8x15x64xbf16>, vector<8x1x64xbf16> -> vector<8x16x64xbf16>
    %10 = vector.shape_cast %9 : vector<8x16x64xbf16> to vector<128x64xbf16>
    %c0_3 = arith.constant 0 : index
    %c0_4 = arith.constant 0 : index
    %11 = vector.load %arg2[%c0_3, %c0_4] : memref<576x48xbf16, #tpu.memory_space<vmem>>, vector<64x48xbf16>
    %cst_5 = arith.constant dense<0.000000e+00> : vector<128x48xf32>
    %12 = tpu.matmul %6, %11, %cst_5 {dimension_numbers = #tpu.dot_dimension_numbers<[1], [0], [0], [1], [0, 0, 1, 1], [], []>} : vector<128x64xbf16>, vector<64x48xbf16>, vector<128x48xf32> -> vector<128x48xf32>
    %c64 = arith.constant 64 : index
    %c0_6 = arith.constant 0 : index
    %13 = vector.load %arg2[%c64, %c0_6] : memref<576x48xbf16, #tpu.memory_space<vmem>>, vector<64x48xbf16>
    %cst_7 = arith.constant dense<0.000000e+00> : vector<128x48xf32>
    %14 = tpu.matmul %7, %13, %cst_7 {dimension_numbers = #tpu.dot_dimension_numbers<[1], [0], [0], [1], [0, 0, 1, 1], [], []>} : vector<128x64xbf16>, vector<64x48xbf16>, vector<128x48xf32> -> vector<128x48xf32>
    %15 = arith.addf %12, %14 : vector<128x48xf32>
    %c128 = arith.constant 128 : index
    %c0_8 = arith.constant 0 : index
    %16 = vector.load %arg2[%c128, %c0_8] : memref<576x48xbf16, #tpu.memory_space<vmem>>, vector<64x48xbf16>
    %cst_9 = arith.constant dense<0.000000e+00> : vector<128x48xf32>
    %17 = tpu.matmul %10, %16, %cst_9 {dimension_numbers = #tpu.dot_dimension_numbers<[1], [0], [0], [1], [0, 0, 1, 1], [], []>} : vector<128x64xbf16>, vector<64x48xbf16>, vector<128x48xf32> -> vector<128x48xf32>
    %18 = arith.addf %15, %17 : vector<128x48xf32>
    %c192 = arith.constant 192 : index
    %c0_10 = arith.constant 0 : index
    %19 = vector.load %arg2[%c192, %c0_10] : memref<576x48xbf16, #tpu.memory_space<vmem>>, vector<64x48xbf16>
    %cst_11 = arith.constant dense<0.000000e+00> : vector<128x48xf32>
    %20 = tpu.matmul %6, %19, %cst_11 {dimension_numbers = #tpu.dot_dimension_numbers<[1], [0], [0], [1], [0, 0, 1, 1], [], []>} : vector<128x64xbf16>, vector<64x48xbf16>, vector<128x48xf32> -> vector<128x48xf32>
    %c256 = arith.constant 256 : index
    %c0_12 = arith.constant 0 : index
    %21 = vector.load %arg2[%c256, %c0_12] : memref<576x48xbf16, #tpu.memory_space<vmem>>, vector<64x48xbf16>
    %cst_13 = arith.constant dense<0.000000e+00> : vector<128x48xf32>
    %22 = tpu.matmul %7, %21, %cst_13 {dimension_numbers = #tpu.dot_dimension_numbers<[1], [0], [0], [1], [0, 0, 1, 1], [], []>} : vector<128x64xbf16>, vector<64x48xbf16>, vector<128x48xf32> -> vector<128x48xf32>
    %23 = arith.addf %20, %22 : vector<128x48xf32>
    %c320 = arith.constant 320 : index
    %c0_14 = arith.constant 0 : index
    %24 = vector.load %arg2[%c320, %c0_14] : memref<576x48xbf16, #tpu.memory_space<vmem>>, vector<64x48xbf16>
    %cst_15 = arith.constant dense<0.000000e+00> : vector<128x48xf32>
    %25 = tpu.matmul %10, %24, %cst_15 {dimension_numbers = #tpu.dot_dimension_numbers<[1], [0], [0], [1], [0, 0, 1, 1], [], []>} : vector<128x64xbf16>, vector<64x48xbf16>, vector<128x48xf32> -> vector<128x48xf32>
    %26 = arith.addf %23, %25 : vector<128x48xf32>
    %c384 = arith.constant 384 : index
    %c0_16 = arith.constant 0 : index
    %27 = vector.load %arg2[%c384, %c0_16] : memref<576x48xbf16, #tpu.memory_space<vmem>>, vector<64x48xbf16>
    %cst_17 = arith.constant dense<0.000000e+00> : vector<128x48xf32>
    %28 = tpu.matmul %6, %27, %cst_17 {dimension_numbers = #tpu.dot_dimension_numbers<[1], [0], [0], [1], [0, 0, 1, 1], [], []>} : vector<128x64xbf16>, vector<64x48xbf16>, vector<128x48xf32> -> vector<128x48xf32>
    %c448 = arith.constant 448 : index
    %c0_18 = arith.constant 0 : index
    %29 = vector.load %arg2[%c448, %c0_18] : memref<576x48xbf16, #tpu.memory_space<vmem>>, vector<64x48xbf16>
    %cst_19 = arith.constant dense<0.000000e+00> : vector<128x48xf32>
    %30 = tpu.matmul %7, %29, %cst_19 {dimension_numbers = #tpu.dot_dimension_numbers<[1], [0], [0], [1], [0, 0, 1, 1], [], []>} : vector<128x64xbf16>, vector<64x48xbf16>, vector<128x48xf32> -> vector<128x48xf32>
    %31 = arith.addf %28, %30 : vector<128x48xf32>
    %c512 = arith.constant 512 : index
    %c0_20 = arith.constant 0 : index
    %32 = vector.load %arg2[%c512, %c0_20] : memref<576x48xbf16, #tpu.memory_space<vmem>>, vector<64x48xbf16>
    %cst_21 = arith.constant dense<0.000000e+00> : vector<128x48xf32>
    %33 = tpu.matmul %10, %32, %cst_21 {dimension_numbers = #tpu.dot_dimension_numbers<[1], [0], [0], [1], [0, 0, 1, 1], [], []>} : vector<128x64xbf16>, vector<64x48xbf16>, vector<128x48xf32> -> vector<128x48xf32>
    %34 = arith.addf %31, %33 : vector<128x48xf32>
    %cst_22 = arith.constant 0.000000e+00 : f32
    %35 = vector.broadcast %cst_22 : f32 to vector<16x48xf32>
    %36 = vector.extract_strided_slice %18 {offsets = [0, 0], sizes = [112, 48], strides = [1, 1]} : vector<128x48xf32> to vector<112x48xf32>
    %37 = tpu.concatenate %35, %36 in 0 : vector<16x48xf32>, vector<112x48xf32> -> vector<128x48xf32>
    %38 = arith.addf %26, %37 : vector<128x48xf32>
    %39 = vector.extract_strided_slice %34 {offsets = [16, 0], sizes = [112, 48], strides = [1, 1]} : vector<128x48xf32> to vector<112x48xf32>
    %40 = tpu.concatenate %39, %35 in 0 : vector<112x48xf32>, vector<16x48xf32> -> vector<128x48xf32>
    %41 = arith.addf %38, %40 : vector<128x48xf32>
    %c0_23 = arith.constant 0 : index
    %c0_24 = arith.constant 0 : index
    %42 = vector.load %arg3[%c0_23, %c0_24] : memref<1x48xf32, #tpu.memory_space<vmem>>, vector<1x48xf32>
    %43 = vector.broadcast %42 : vector<1x48xf32> to vector<128x48xf32>
    %44 = arith.addf %41, %43 : vector<128x48xf32>
    %cst_25 = arith.constant 0.000000e+00 : f32
    %45 = vector.broadcast %cst_25 : f32 to vector<128x48xf32>
    %46 = arith.cmpf oge, %44, %45 : vector<128x48xf32>
    %cst_26 = arith.constant 2.000000e-01 : f32
    %47 = vector.broadcast %cst_26 : f32 to vector<128x48xf32>
    %48 = arith.mulf %47, %44 : vector<128x48xf32>
    %49 = arith.select %46, %44, %48 : vector<128x48xi1>, vector<128x48xf32>
    %50 = arith.truncf %49 : vector<128x48xf32> to vector<128x48xbf16>
    %51 = vector.shape_cast %50 : vector<128x48xbf16> to vector<8x16x48xbf16>
    %cst_27 = arith.constant 0.000000e+00 : bf16
    %52 = vector.broadcast %cst_27 : bf16 to vector<8x1x48xbf16>
    %53 = vector.extract_strided_slice %51 {offsets = [0, 0, 0], sizes = [8, 15, 48], strides = [1, 1, 1]} : vector<8x16x48xbf16> to vector<8x15x48xbf16>
    %54 = tpu.concatenate %52, %53 in 1 : vector<8x1x48xbf16>, vector<8x15x48xbf16> -> vector<8x16x48xbf16>
    %55 = vector.shape_cast %54 : vector<8x16x48xbf16> to vector<128x48xbf16>
    %56 = vector.shape_cast %51 : vector<8x16x48xbf16> to vector<128x48xbf16>
    %57 = vector.extract_strided_slice %51 {offsets = [0, 1, 0], sizes = [8, 15, 48], strides = [1, 1, 1]} : vector<8x16x48xbf16> to vector<8x15x48xbf16>
    %58 = tpu.concatenate %57, %52 in 1 : vector<8x15x48xbf16>, vector<8x1x48xbf16> -> vector<8x16x48xbf16>
    %59 = vector.shape_cast %58 : vector<8x16x48xbf16> to vector<128x48xbf16>
    %c0_28 = arith.constant 0 : index
    %c0_29 = arith.constant 0 : index
    %60 = vector.load %arg4[%c0_28, %c0_29] : memref<432x48xbf16, #tpu.memory_space<vmem>>, vector<48x48xbf16>
    %cst_30 = arith.constant dense<0.000000e+00> : vector<128x48xf32>
    %61 = tpu.matmul %55, %60, %cst_30 {dimension_numbers = #tpu.dot_dimension_numbers<[1], [0], [0], [1], [0, 0, 1, 1], [], []>} : vector<128x48xbf16>, vector<48x48xbf16>, vector<128x48xf32> -> vector<128x48xf32>
    %c48 = arith.constant 48 : index
    %c0_31 = arith.constant 0 : index
    %62 = vector.load %arg4[%c48, %c0_31] : memref<432x48xbf16, #tpu.memory_space<vmem>>, vector<48x48xbf16>
    %cst_32 = arith.constant dense<0.000000e+00> : vector<128x48xf32>
    %63 = tpu.matmul %56, %62, %cst_32 {dimension_numbers = #tpu.dot_dimension_numbers<[1], [0], [0], [1], [0, 0, 1, 1], [], []>} : vector<128x48xbf16>, vector<48x48xbf16>, vector<128x48xf32> -> vector<128x48xf32>
    %64 = arith.addf %61, %63 : vector<128x48xf32>
    %c96 = arith.constant 96 : index
    %c0_33 = arith.constant 0 : index
    %65 = vector.load %arg4[%c96, %c0_33] : memref<432x48xbf16, #tpu.memory_space<vmem>>, vector<48x48xbf16>
    %cst_34 = arith.constant dense<0.000000e+00> : vector<128x48xf32>
    %66 = tpu.matmul %59, %65, %cst_34 {dimension_numbers = #tpu.dot_dimension_numbers<[1], [0], [0], [1], [0, 0, 1, 1], [], []>} : vector<128x48xbf16>, vector<48x48xbf16>, vector<128x48xf32> -> vector<128x48xf32>
    %67 = arith.addf %64, %66 : vector<128x48xf32>
    %c144 = arith.constant 144 : index
    %c0_35 = arith.constant 0 : index
    %68 = vector.load %arg4[%c144, %c0_35] : memref<432x48xbf16, #tpu.memory_space<vmem>>, vector<48x48xbf16>
    %cst_36 = arith.constant dense<0.000000e+00> : vector<128x48xf32>
    %69 = tpu.matmul %55, %68, %cst_36 {dimension_numbers = #tpu.dot_dimension_numbers<[1], [0], [0], [1], [0, 0, 1, 1], [], []>} : vector<128x48xbf16>, vector<48x48xbf16>, vector<128x48xf32> -> vector<128x48xf32>
    %c192_37 = arith.constant 192 : index
    %c0_38 = arith.constant 0 : index
    %70 = vector.load %arg4[%c192_37, %c0_38] : memref<432x48xbf16, #tpu.memory_space<vmem>>, vector<48x48xbf16>
    %cst_39 = arith.constant dense<0.000000e+00> : vector<128x48xf32>
    %71 = tpu.matmul %56, %70, %cst_39 {dimension_numbers = #tpu.dot_dimension_numbers<[1], [0], [0], [1], [0, 0, 1, 1], [], []>} : vector<128x48xbf16>, vector<48x48xbf16>, vector<128x48xf32> -> vector<128x48xf32>
    %72 = arith.addf %69, %71 : vector<128x48xf32>
    %c240 = arith.constant 240 : index
    %c0_40 = arith.constant 0 : index
    %73 = vector.load %arg4[%c240, %c0_40] : memref<432x48xbf16, #tpu.memory_space<vmem>>, vector<48x48xbf16>
    %cst_41 = arith.constant dense<0.000000e+00> : vector<128x48xf32>
    %74 = tpu.matmul %59, %73, %cst_41 {dimension_numbers = #tpu.dot_dimension_numbers<[1], [0], [0], [1], [0, 0, 1, 1], [], []>} : vector<128x48xbf16>, vector<48x48xbf16>, vector<128x48xf32> -> vector<128x48xf32>
    %75 = arith.addf %72, %74 : vector<128x48xf32>
    %c288 = arith.constant 288 : index
    %c0_42 = arith.constant 0 : index
    %76 = vector.load %arg4[%c288, %c0_42] : memref<432x48xbf16, #tpu.memory_space<vmem>>, vector<48x48xbf16>
    %cst_43 = arith.constant dense<0.000000e+00> : vector<128x48xf32>
    %77 = tpu.matmul %55, %76, %cst_43 {dimension_numbers = #tpu.dot_dimension_numbers<[1], [0], [0], [1], [0, 0, 1, 1], [], []>} : vector<128x48xbf16>, vector<48x48xbf16>, vector<128x48xf32> -> vector<128x48xf32>
    %c336 = arith.constant 336 : index
    %c0_44 = arith.constant 0 : index
    %78 = vector.load %arg4[%c336, %c0_44] : memref<432x48xbf16, #tpu.memory_space<vmem>>, vector<48x48xbf16>
    %cst_45 = arith.constant dense<0.000000e+00> : vector<128x48xf32>
    %79 = tpu.matmul %56, %78, %cst_45 {dimension_numbers = #tpu.dot_dimension_numbers<[1], [0], [0], [1], [0, 0, 1, 1], [], []>} : vector<128x48xbf16>, vector<48x48xbf16>, vector<128x48xf32> -> vector<128x48xf32>
    %80 = arith.addf %77, %79 : vector<128x48xf32>
    %c384_46 = arith.constant 384 : index
    %c0_47 = arith.constant 0 : index
    %81 = vector.load %arg4[%c384_46, %c0_47] : memref<432x48xbf16, #tpu.memory_space<vmem>>, vector<48x48xbf16>
    %cst_48 = arith.constant dense<0.000000e+00> : vector<128x48xf32>
    %82 = tpu.matmul %59, %81, %cst_48 {dimension_numbers = #tpu.dot_dimension_numbers<[1], [0], [0], [1], [0, 0, 1, 1], [], []>} : vector<128x48xbf16>, vector<48x48xbf16>, vector<128x48xf32> -> vector<128x48xf32>
    %83 = arith.addf %80, %82 : vector<128x48xf32>
    %cst_49 = arith.constant 0.000000e+00 : f32
    %84 = vector.broadcast %cst_49 : f32 to vector<16x48xf32>
    %85 = vector.extract_strided_slice %67 {offsets = [0, 0], sizes = [112, 48], strides = [1, 1]} : vector<128x48xf32> to vector<112x48xf32>
    %86 = tpu.concatenate %84, %85 in 0 : vector<16x48xf32>, vector<112x48xf32> -> vector<128x48xf32>
    %87 = arith.addf %75, %86 : vector<128x48xf32>
    %88 = vector.extract_strided_slice %83 {offsets = [16, 0], sizes = [112, 48], strides = [1, 1]} : vector<128x48xf32> to vector<112x48xf32>
    %89 = tpu.concatenate %88, %84 in 0 : vector<112x48xf32>, vector<16x48xf32> -> vector<128x48xf32>
    %90 = arith.addf %87, %89 : vector<128x48xf32>
    %c0_50 = arith.constant 0 : index
    %c0_51 = arith.constant 0 : index
    %91 = vector.load %arg5[%c0_50, %c0_51] : memref<1x48xf32, #tpu.memory_space<vmem>>, vector<1x48xf32>
    %92 = vector.broadcast %91 : vector<1x48xf32> to vector<128x48xf32>
    %93 = arith.addf %90, %92 : vector<128x48xf32>
    %94 = vector.shape_cast %93 : vector<128x48xf32> to vector<1x128x48xf32>
    %c0_52 = arith.constant 0 : index
    %c0_53 = arith.constant 0 : index
    %c0_54 = arith.constant 0 : index
    %95 = vector.load %arg6[%c0_52, %c0_53, %c0_54] : memref<1x128x48xf32, #tpu.memory_space<vmem>>, vector<1x128x48xf32>
    tpu.vector_store %arg6[%c0_52, %c0_53, %c0_54], %94 {strides = array<i32>} : memref<1x128x48xf32, #tpu.memory_space<vmem>>, vector<1x128x48xf32>,
    return
  }
  func.func @transform_0(%arg0: i32) -> (i32, i32, i32, i32) {
    %c0_i32 = arith.constant 0 : i32
    %c0_i32_0 = arith.constant 0 : i32
    %c0_i32_1 = arith.constant 0 : i32
    %c0_i32_2 = arith.constant 0 : i32
    return %arg0, %c0_i32, %c0_i32_0, %c0_i32_1 : i32, i32, i32, i32
  }
  func.func @transform_1(%arg0: i32) -> (i32, i32) {
    %c0_i32 = arith.constant 0 : i32
    %c0_i32_0 = arith.constant 0 : i32
    %c0_i32_1 = arith.constant 0 : i32
    return %c0_i32, %c0_i32_0 : i32, i32
  }
  func.func @transform_2(%arg0: i32) -> (i32, i32) {
    %c0_i32 = arith.constant 0 : i32
    %c0_i32_0 = arith.constant 0 : i32
    %c0_i32_1 = arith.constant 0 : i32
    return %c0_i32, %c0_i32_0 : i32, i32
  }
  func.func @transform_3(%arg0: i32) -> (i32, i32) {
    %c0_i32 = arith.constant 0 : i32
    %c0_i32_0 = arith.constant 0 : i32
    %c0_i32_1 = arith.constant 0 : i32
    return %c0_i32, %c0_i32_0 : i32, i32
  }
  func.func @transform_4(%arg0: i32) -> (i32, i32) {
    %c0_i32 = arith.constant 0 : i32
    %c0_i32_0 = arith.constant 0 : i32
    %c0_i32_1 = arith.constant 0 : i32
    return %c0_i32, %c0_i32_0 : i32, i32
  }
  func.func @transform_5(%arg0: i32) -> (i32, i32, i32) {
    %c0_i32 = arith.constant 0 : i32
    %c0_i32_0 = arith.constant 0 : i32
    %c0_i32_1 = arith.constant 0 : i32
    return %arg0, %c0_i32, %c0_i32_0 : i32, i32, i32
  }
}

</mosaic_0001>

<llo_original>
// kernel: upscale_forward.1
$region0: #{upscale_forward.1}
  #allocation0 [shape = 'u32[]', space=smem, size = 0x4, offset = 0x4, fixed_abs, tag = 'smem constant byte address 0x4 - core index']
  #allocation1 [shape = 'u32[72,128]{1,0:T(1,128)}', space=vmem, size = 0x9000, scoped, tag = 'internal scratch']
  %s0 = inlined_call_operand.hbm [shape: f32[2,8,16,64], index: 0, kind: input, shape index: {}]
  %s1 = inlined_call_operand.vmem [shape: bf16[576,48], index: 1, kind: input, shape index: {}]
  %s2 = inlined_call_operand.hbm [shape: f32[1,48], index: 2, kind: input, shape index: {}]
  %s3 = inlined_call_operand.vmem [shape: bf16[432,48], index: 3, kind: input, shape index: {}]
  %s4 = inlined_call_operand.hbm [shape: f32[1,48], index: 4, kind: input, shape index: {}]
  %s5 = inlined_call_operand.vmem [shape: f32[2,128,48], index: 5, kind: output, shape index: {}]
  %s6 = sld [smem:[#allocation0]]
  $region65: #{upscale_forward.1} parent=0
    _
  %s8 = ssub.s32 1, %s6
  %s9 = scalar_select 0, %s8, %s6
  $region1: #{upscale_forward.1} parent=0
    #allocation2 [shape = 'u8[131072]{0}', space=vmem, size = 0x20000, scoped, tag = 'input window, operand 0']
    #allocation3 [shape = 's32[2]{0}', space=sflag, size = 0x8, scoped, tag = 'scoped memory for upscale_forward.1']
    #allocation4 [shape = 'u8[512]{0}', space=vmem, size = 0x400, scoped, tag = 'input window, operand 2, single buffered']
    #allocation5 [shape = 's32[1]{0}', space=sflag, size = 0x4, scoped, tag = 'scoped memory for upscale_forward.1']
    #allocation6 [shape = 'u8[512]{0}', space=vmem, size = 0x400, scoped, tag = 'input window, operand 4, single buffered']
    %10 = vsyncpa [#allocation3], 0
    %s11 = scalar_lea.sflag [#allocation3], 1
    %12 = vsyncpa %s11, 0
    %13 = vsyncpa [#allocation5], 0
    loop: start=0, step=1, limit=4
    $region2: #{upscale_forward.1} parent=1 // loop_pre_header
      _
    $region3: #{upscale_forward.1} parent=1 // loop_header
      %s15 = sphi 0, %s19
      %p16 = scmp.ge.s32.totalorder %s15, 4
      %s25 = sphi 0, %s27
      %s28 = sphi 0, %s25
      %s29 = sphi 0, %s28
      %s45 = sphi 0, %s29
      %s49 = sphi 0, %s49
      %s51 = sphi 0, %s49
      %s52 = sphi 0, %s51
      %s66 = sphi 0, %s52
      %s70 = sphi 0, %s70
      %s72 = sphi 0, %s70
      %s73 = sphi 0, %s72
      %s87 = sphi 0, %s73
      %s91 = sphi 0, %s91
      %s93 = sphi 0, %s91
      %s94 = sphi 0, %s93
      %s108 = sphi 0, %s94
      %s112 = sphi 0, %s112
      %s114 = sphi 0, %s112
      %s115 = sphi 0, %s114
      %s129 = sphi 0, %s115
      %s135 = sphi 0, %s137
      %s138 = sphi 0, %s135
      %s139 = sphi 0, %s138
      %s155 = sphi 0, %s139
    $region4: #{upscale_forward.1} parent=1 // loop_header_branch
      %18 = sbr.rel (%p16) target = $region8
    $region5: #{upscale_forward.1} parent=1 // loop_body
      %s20 = ssub.s32 %s15, 1
      %s21 = ssub.s32 %s15, 2
      %s22 = sadd.s32 %s15, 1
      %s23 = ssub.s32 %s15, %s22
      %p24 = scmp.eq.s32.totalorder %s23, 0
      %s26 = sadd.s32 %s25, 1
      %s27 = scalar_select %p24, %s25, %s26
      %p30 = pneg %p24
      %p31 = scmp.eq.s32.totalorder %s15, 1
      %p32 = por %p30, %p31
      %p33 = scmp.ne.s32.totalorder %s25, %s28
      %p34 = scmp.eq.s32.totalorder %s15, 0
      %p35 = por %p33, %p34
      %p36 = scmp.ne.s32.totalorder %s25, %s28
      %p37 = scmp.eq.s32.totalorder %s20, 1
      %p38 = por %p36, %p37
      %p39 = scmp.ne.s32.totalorder %s28, %s29
      %p40 = scmp.eq.s32.totalorder %s20, 0
      %p41 = por %p39, %p40
      %p42 = scmp.ne.s32.totalorder %s28, %s29
      %p43 = scmp.eq.s32.totalorder %s21, 1
      %p44 = por %p42, %p43
      %p46 = scmp.ne.s32.totalorder %s29, %s45
      %p47 = scmp.eq.s32.totalorder %s21, 0
      %p48 = por %p46, %p47
      %s50 = sadd.s32 %s49, 1
      %p53 = scmp.eq.s32.totalorder %s15, 1
      %p54 = scmp.ne.s32.totalorder %s49, %s51
      %p55 = scmp.eq.s32.totalorder %s15, 0
      %p56 = por %p54, %p55
      %p57 = scmp.ne.s32.totalorder %s49, %s51
      %p58 = scmp.eq.s32.totalorder %s20, 1
      %p59 = por %p57, %p58
      %p60 = scmp.ne.s32.totalorder %s51, %s52
      %p61 = scmp.eq.s32.totalorder %s20, 0
      %p62 = por %p60, %p61
      %p63 = scmp.ne.s32.totalorder %s51, %s52
      %p64 = scmp.eq.s32.totalorder %s21, 1
      %p65 = por %p63, %p64
      %p67 = scmp.ne.s32.totalorder %s52, %s66
      %p68 = scmp.eq.s32.totalorder %s21, 0
      %p69 = por %p67, %p68
      %s71 = sadd.s32 %s70, 1
      %p74 = scmp.eq.s32.totalorder %s15, 1
      %p75 = scmp.ne.s32.totalorder %s70, %s72
      %p76 = scmp.eq.s32.totalorder %s15, 0
      %p77 = por %p75, %p76
      %p78 = scmp.ne.s32.totalorder %s70, %s72
      %p79 = scmp.eq.s32.totalorder %s20, 1
      %p80 = por %p78, %p79
      %p81 = scmp.ne.s32.totalorder %s72, %s73
      %p82 = scmp.eq.s32.totalorder %s20, 0
      %p83 = por %p81, %p82
      %p84 = scmp.ne.s32.totalorder %s72, %s73
      %p85 = scmp.eq.s32.totalorder %s21, 1
      %p86 = por %p84, %p85
      %p88 = scmp.ne.s32.totalorder %s73, %s87
      %p89 = scmp.eq.s32.totalorder %s21, 0
      %p90 = por %p88, %p89
      %s92 = sadd.s32 %s91, 1
      %p95 = scmp.eq.s32.totalorder %s15, 1
      %p96 = scmp.ne.s32.totalorder %s91, %s93
      %p97 = scmp.eq.s32.totalorder %s15, 0
      %p98 = por %p96, %p97
      %p99 = scmp.ne.s32.totalorder %s91, %s93
      %p100 = scmp.eq.s32.totalorder %s20, 1
      %p101 = por %p99, %p100
      %p102 = scmp.ne.s32.totalorder %s93, %s94
      %p103 = scmp.eq.s32.totalorder %s20, 0
      %p104 = por %p102, %p103
      %p105 = scmp.ne.s32.totalorder %s93, %s94
      %p106 = scmp.eq.s32.totalorder %s21, 1
      %p107 = por %p105, %p106
      %p109 = scmp.ne.s32.totalorder %s94, %s108
      %p110 = scmp.eq.s32.totalorder %s21, 0
      %p111 = por %p109, %p110
      %s113 = sadd.s32 %s112, 1
      %p116 = scmp.eq.s32.totalorder %s15, 1
      %p117 = scmp.ne.s32.totalorder %s112, %s114
      %p118 = scmp.eq.s32.totalorder %s15, 0
      %p119 = por %p117, %p118
      %p120 = scmp.ne.s32.totalorder %s112, %s114
      %p121 = scmp.eq.s32.totalorder %s20, 1
      %p122 = por %p120, %p121
      %p123 = scmp.ne.s32.totalorder %s114, %s115
      %p124 = scmp.eq.s32.totalorder %s20, 0
      %p125 = por %p123, %p124
      %p126 = scmp.ne.s32.totalorder %s114, %s115
      %p127 = scmp.eq.s32.totalorder %s21, 1
      %p128 = por %p126, %p127
      %p130 = scmp.ne.s32.totalorder %s115, %s129
      %p131 = scmp.eq.s32.totalorder %s21, 0
      %p132 = por %p130, %p131
      %s133 = ssub.s32 %s15, %s22
      %p134 = scmp.eq.s32.totalorder %s133, 0
      %s136 = sadd.s32 %s135, 1
      %s137 = scalar_select %p134, %s135, %s136
      %p140 = pneg %p134
      %p141 = scmp.eq.s32.totalorder %s15, 1
      %p142 = por %p140, %p141
      %p143 = scmp.ne.s32.totalorder %s135, %s138
      %p144 = scmp.eq.s32.totalorder %s15, 0
      %p145 = por %p143, %p144
      %p146 = scmp.ne.s32.totalorder %s135, %s138
      %p147 = scmp.eq.s32.totalorder %s20, 1
      %p148 = por %p146, %p147
      %p149 = scmp.ne.s32.totalorder %s138, %s139
      %p150 = scmp.eq.s32.totalorder %s20, 0
      %p151 = por %p149, %p150
      %p152 = scmp.ne.s32.totalorder %s138, %s139
      %p153 = scmp.eq.s32.totalorder %s21, 1
      %p154 = por %p152, %p153
      %p156 = scmp.ne.s32.totalorder %s139, %s155
      %p157 = scmp.eq.s32.totalorder %s21, 0
      %p158 = por %p156, %p157
      %p159 = scmp.le.s32.totalorder 1, %s15
      %p160 = scmp.lt.s32.totalorder %s15, 3
      %p161 = pnand %p159, %p160
      %p162 = pneg %p161
      // Predicated region
      $region9: #{upscale_forward.1} parent=5 // pred_check
        _
      $region10: #{upscale_forward.1} parent=5 // pred_check_branch
        %164 = sbr.rel (%p161) target = $region12
      $region11: #{upscale_forward.1} parent=5 // pred_region
        %s165 = ssub.s32 %s15, 1
        // Predicated region
        $region13: #{upscale_forward.1} parent=11 // pred_check
          %p166 = pneg %p62
        $region14: #{upscale_forward.1} parent=11 // pred_check_branch
          %168 = sbr.rel (%p166) target = $region16
        $region15: #{upscale_forward.1} parent=11 // pred_region
          _
        $region16: #{upscale_forward.1} parent=11 // pred_fallthru
          _
        // Predicated region
        $region17: #{upscale_forward.1} parent=11 // pred_check
          %p169 = pneg %p83
        $region18: #{upscale_forward.1} parent=11 // pred_check_branch
          %171 = sbr.rel (%p169) target = $region20
        $region19: #{upscale_forward.1} parent=11 // pred_region
          %173 = vsyncadd [#allocation5], 0
          %s175 = sshll.u32 %s2, 4
          %s176 = int_to_ptr.hbm [resolvable:$true] %s175
          %s177 = sshll.u32 [#allocation4], 4
          %s178 = int_to_ptr.vmem [resolvable:$true] %s177
          %180 = dma.hbm_to_vmem [thread:$0]  %s176, 16, %s178, [#allocation5]
        $region20: #{upscale_forward.1} parent=11 // pred_fallthru
          _
        // Predicated region
        $region21: #{upscale_forward.1} parent=11 // pred_check
          %p181 = pneg %p104
        $region22: #{upscale_forward.1} parent=11 // pred_check_branch
          %183 = sbr.rel (%p181) target = $region24
        $region23: #{upscale_forward.1} parent=11 // pred_region
          _
        $region24: #{upscale_forward.1} parent=11 // pred_fallthru
          _
        // Predicated region
        $region25: #{upscale_forward.1} parent=11 // pred_check
          %p184 = pneg %p125
        $region26: #{upscale_forward.1} parent=11 // pred_check_branch
          %186 = sbr.rel (%p184) target = $region28
        $region27: #{upscale_forward.1} parent=11 // pred_region
          %188 = vsyncadd [#allocation5], 0
          %s190 = sshll.u32 %s4, 4
          %s191 = int_to_ptr.hbm [resolvable:$true] %s190
          %s192 = sshll.u32 [#allocation6], 4
          %s193 = int_to_ptr.vmem [resolvable:$true] %s192
          %195 = dma.hbm_to_vmem [thread:$0]  %s191, 16, %s193, [#allocation5]
        $region28: #{upscale_forward.1} parent=11 // pred_fallthru
          _
      $region12: #{upscale_forward.1} parent=5 // pred_fallthru
        _
      %p196 = scmp.lt.s32.totalorder %s15, 2
      // Predicated region
      $region29: #{upscale_forward.1} parent=5 // pred_check
        %p197 = pneg %p196
      $region30: #{upscale_forward.1} parent=5 // pred_check_branch
        %199 = sbr.rel (%p197) target = $region32
      $region31: #{upscale_forward.1} parent=5 // pred_region
        // Predicated region
        $region33: #{upscale_forward.1} parent=31 // pred_check
          %p200 = pneg %p35
        $region34: #{upscale_forward.1} parent=31 // pred_check_branch
          %202 = sbr.rel (%p200) target = $region36
        $region35: #{upscale_forward.1} parent=31 // pred_region
          %s203 = sand.u32 %s25, 1
          %s204 = scalar_lea.sflag [#allocation3], %s203
          %s205 = sand.u32 %s25, 1
          %s206 = smul.addr %s205, 128
          %s207 = scalar_lea.vmem [#allocation2], %s206
          %209 = vsyncadd %s204, 0
          %s210 = smul.addr %s15, 16
          %s211 = smul.addr %s210, 8
          %s212 = scalar_lea.hbm %s0, %s211
          %s213 = sshll.u32 %s212, 4
          %s214 = int_to_ptr.hbm [resolvable:$true] %s213
          %s215 = sshll.u32 %s207, 4
          %s216 = int_to_ptr.vmem [resolvable:$true] %s215
          %221 = dma.hbm_to_vmem [thread:$0]  %s214, 2048, %s216, %s204, 128, 128, 8
        $region36: #{upscale_forward.1} parent=31 // pred_fallthru
          _
      $region32: #{upscale_forward.1} parent=5 // pred_fallthru
        _
      %p222 = scmp.le.s32.totalorder 1, %s15
      %p223 = scmp.lt.s32.totalorder %s15, 3
      %p224 = pnand %p222, %p223
      %p225 = pneg %p224
      // Predicated region
      $region37: #{upscale_forward.1} parent=5 // pred_check
        _
      $region38: #{upscale_forward.1} parent=5 // pred_check_branch
        %227 = sbr.rel (%p224) target = $region40
      $region39: #{upscale_forward.1} parent=5 // pred_region
        %s228 = ssub.s32 %s15, 1
        %s229 = sand.u32 %s28, 1
        %s230 = scalar_lea.sflag [#allocation3], %s229
        %s231 = sand.u32 %s28, 1
        %s232 = smul.addr %s231, 128
        %s233 = scalar_lea.vmem [#allocation2], %s232
        // Predicated region
        $region41: #{upscale_forward.1} parent=39 // pred_check
          %p234 = pneg %p41
        $region42: #{upscale_forward.1} parent=39 // pred_check_branch
          %236 = sbr.rel (%p234) target = $region44
        $region43: #{upscale_forward.1} parent=39 // pred_region
          %238 = dma.done %s230, 2048
        $region44: #{upscale_forward.1} parent=39 // pred_fallthru
          _
        // Predicated region
        $region45: #{upscale_forward.1} parent=39 // pred_check
          %p239 = pneg %p83
        $region46: #{upscale_forward.1} parent=39 // pred_check_branch
          %241 = sbr.rel (%p239) target = $region48
        $region47: #{upscale_forward.1} parent=39 // pred_region
          %243 = dma.done [#allocation5], 16
        $region48: #{upscale_forward.1} parent=39 // pred_fallthru
          _
        // Predicated region
        $region49: #{upscale_forward.1} parent=39 // pred_check
          %p244 = pneg %p125
        $region50: #{upscale_forward.1} parent=39 // pred_check_branch
          %246 = sbr.rel (%p244) target = $region52
        $region51: #{upscale_forward.1} parent=39 // pred_region
          %248 = dma.done [#allocation5], 16
        $region52: #{upscale_forward.1} parent=39 // pred_fallthru
          _
        %s249 = sand.u32 %s28, 1
        %s250 = scalar_lea.sflag [#allocation3], %s249
        %s251 = sand.u32 %s28, 1
        %s252 = smul.addr %s251, 128
        %s253 = scalar_lea.vmem [#allocation2], %s252
        %p254 = pneg %p41
        %p255 = pneg %p38
        %p256 = pneg %p62
        %p257 = pneg %p59
        %p258 = pneg %p83
        %p259 = pneg %p80
        %p260 = pneg %p104
        %p261 = pneg %p101
        %p262 = pneg %p125
        %p263 = pneg %p122
        %p264 = pneg %p151
        %p265 = pneg %p148
        %p266 = scmp.lt.s32.totalorder %s20, 1
        %s267 = scalar_select %p266, %s20, 1
        %s268 = smul.addr %s267, 16
        %s269 = smul.addr %s268, 8
        %s270 = scalar_lea.vmem %s5, %s269
        %p271 = scmp.lt.s32.totalorder %s20, 1
        %s272 = scalar_select %p271, %s20, 1
        %s273 = smul.addr %s272, 16
        %s274 = smul.addr %s273, 8
        %s275 = scalar_lea.vmem %s5, %s274
        %v277 = vld [vmem:[%s233] sm:$0xff]
        %v278 = vld [vmem:[%s233 + $0x8] sm:$0xff]
        %v279 = vld [vmem:[%s233 + $0x10] sm:$0xff]
        %v280 = vld [vmem:[%s233 + $0x18] sm:$0xff]
        %v281 = vld [vmem:[%s233 + $0x20] sm:$0xff]
        %v282 = vld [vmem:[%s233 + $0x28] sm:$0xff]
        %v283 = vld [vmem:[%s233 + $0x30] sm:$0xff]
        %v284 = vld [vmem:[%s233 + $0x38] sm:$0xff]
        %v285 = vld [vmem:[%s233 + $0x40] sm:$0xff]
        %v286 = vld [vmem:[%s233 + $0x48] sm:$0xff]
        %v287 = vld [vmem:[%s233 + $0x50] sm:$0xff]
        %v288 = vld [vmem:[%s233 + $0x58] sm:$0xff]
        %v289 = vld [vmem:[%s233 + $0x60] sm:$0xff]
        %v290 = vld [vmem:[%s233 + $0x68] sm:$0xff]
        %v291 = vld [vmem:[%s233 + $0x70] sm:$0xff]
        %v292 = vld [vmem:[%s233 + $0x78] sm:$0xff]
        %v293 = vpack.c.bf16 %v277, %v277
        %v294 = vpack.c.bf16 %v278, %v278
        %v295 = vpack.c.bf16 %v279, %v279
        %v296 = vpack.c.bf16 %v280, %v280
        %v297 = vpack.c.bf16 %v281, %v281
        %v298 = vpack.c.bf16 %v282, %v282
        %v299 = vpack.c.bf16 %v283, %v283
        %v300 = vpack.c.bf16 %v284, %v284
        %v301 = vpack.c.bf16 %v285, %v285
        %v302 = vpack.c.bf16 %v286, %v286
        %v303 = vpack.c.bf16 %v287, %v287
        %v304 = vpack.c.bf16 %v288, %v288
        %v305 = vpack.c.bf16 %v289, %v289
        %v306 = vpack.c.bf16 %v290, %v290
        %v307 = vpack.c.bf16 %v291, %v291
        %v308 = vpack.c.bf16 %v292, %v292
        %v325 = vunpack.c.l.b16 %v293
        %v326 = vunpack.c.l.b16 %v294
        %v327 = vunpack.c.l.b16 %v295
        %v328 = vunpack.c.l.b16 %v296
        %v329 = vunpack.c.l.b16 %v297
        %v330 = vunpack.c.l.b16 %v298
        %v331 = vunpack.c.l.b16 %v299
        %v332 = vunpack.c.l.b16 %v300
        %v333 = vunpack.c.l.b16 %v301
        %v334 = vunpack.c.l.b16 %v302
        %v335 = vunpack.c.l.b16 %v303
        %v336 = vunpack.c.l.b16 %v304
        %v337 = vunpack.c.l.b16 %v305
        %v338 = vunpack.c.l.b16 %v306
        %v339 = vunpack.c.l.b16 %v307
        %v340 = vunpack.c.l.b16 %v308
        %v341 = vpack.c.b16 %v326, %v325
        %v342 = vpack.c.b16 %v328, %v327
        %v343 = vpack.c.b16 %v330, %v329
        %v344 = vpack.c.b16 %v332, %v331
        %v345 = vpack.c.b16 %v334, %v333
        %v346 = vpack.c.b16 %v336, %v335
        %v347 = vpack.c.b16 %v338, %v337
        %v348 = vpack.c.b16 %v340, %v339
        %v350 = vshrl.u32 %v341, 16
        %v352 = vrot.slane %v350, 7
        %v353 = vshll.u32 %v341, 16
        %v355 = vor.u32 %v352, %v353
        %v357 = vshrl.u32 %v342, 16
        %v359 = vrot.slane %v357, 7
        %v360 = vshll.u32 %v342, 16
        %v362 = vor.u32 %v359, %v360
        %v364 = vshrl.u32 %v343, 16
        %v366 = vrot.slane %v364, 7
        %v367 = vshll.u32 %v343, 16
        %v369 = vor.u32 %v366, %v367
        %v371 = vshrl.u32 %v344, 16
        %v373 = vrot.slane %v371, 7
        %v374 = vshll.u32 %v344, 16
        %v376 = vor.u32 %v373, %v374
        %v378 = vshrl.u32 %v345, 16
        %v380 = vrot.slane %v378, 7
        %v381 = vshll.u32 %v345, 16
        %v383 = vor.u32 %v380, %v381
        %v385 = vshrl.u32 %v346, 16
        %v387 = vrot.slane %v385, 7
        %v388 = vshll.u32 %v346, 16
        %v390 = vor.u32 %v387, %v388
        %v392 = vshrl.u32 %v347, 16
        %v394 = vrot.slane %v392, 7
        %v395 = vshll.u32 %v347, 16
        %v397 = vor.u32 %v394, %v395
        %v399 = vshrl.u32 %v348, 16
        %v401 = vrot.slane %v399, 7
        %v402 = vshll.u32 %v348, 16
        %v404 = vor.u32 %v401, %v402
        %vm413 = vcmask 1040384
        %vm414 = vsmask.f32 256
        %vm415 = vmand %vm413, %vm414
        %v416 = vsel %vm415, 0, %v355
        %v417 = vsel %vm415, 0, %v362
        %v418 = vsel %vm415, 0, %v369
        %v419 = vsel %vm415, 0, %v376
        %v420 = vsel %vm415, 0, %v383
        %v421 = vsel %vm415, 0, %v390
        %v422 = vsel %vm415, 0, %v397
        %v423 = vsel %vm415, 0, %v404
        %v424 = vrot.slane %v353, 1
        %v425 = vor.u32 %v350, %v424
        %v426 = vrot.slane %v360, 1
        %v427 = vor.u32 %v357, %v426
        %v428 = vrot.slane %v367, 1
        %v429 = vor.u32 %v364, %v428
        %v430 = vrot.slane %v374, 1
        %v431 = vor.u32 %v371, %v430
        %v432 = vrot.slane %v381, 1
        %v433 = vor.u32 %v378, %v432
        %v434 = vrot.slane %v388, 1
        %v435 = vor.u32 %v385, %v434
        %v436 = vrot.slane %v395, 1
        %v437 = vor.u32 %v392, %v436
        %v438 = vrot.slane %v402, 1
        %v439 = vor.u32 %v399, %v438
        %vm448 = vcmask 1047552
        %vm449 = vsmask.f32 7424
        %vm450 = vmand %vm448, %vm449
        %v451 = vsel %vm450, %v425, 0
        %v452 = vsel %vm450, %v427, 0
        %v453 = vsel %vm450, %v429, 0
        %v454 = vsel %vm450, %v431, 0
        %v455 = vsel %vm450, %v433, 0
        %v456 = vsel %vm450, %v435, 0
        %v457 = vsel %vm450, %v437, 0
        %v458 = vsel %vm450, %v439, 0
        %v459 = vld [vmem:[%s1] sm:$0xf]
        %v460 = vld [vmem:[%s1 + $0x4] sm:$0xf]
        %v461 = vld [vmem:[%s1 + $0x8] sm:$0xf]
        %v462 = vld [vmem:[%s1 + $0xc] sm:$0xf]
        %v463 = vld [vmem:[%s1 + $0x10] sm:$0xf]
        %v464 = vld [vmem:[%s1 + $0x14] sm:$0xf]
        %v465 = vld [vmem:[%s1 + $0x18] sm:$0xf]
        %v466 = vld [vmem:[%s1 + $0x1c] sm:$0xf]
        %v467 = vld [vmem:[%s1 + $0x20] sm:$0xf]
        %v468 = vld [vmem:[%s1 + $0x24] sm:$0xf]
        %v469 = vld [vmem:[%s1 + $0x28] sm:$0xf]
        %v470 = vld [vmem:[%s1 + $0x2c] sm:$0xf]
        %v471 = vld [vmem:[%s1 + $0x30] sm:$0xf]
        %v472 = vld [vmem:[%s1 + $0x34] sm:$0xf]
        %v473 = vld [vmem:[%s1 + $0x38] sm:$0xf]
        %v474 = vld [vmem:[%s1 + $0x3c] sm:$0xf]
        %v483 = vunpack.c.l.b16 %v467
        %v484 = vunpack.c.l.b16 %v468
        %v485 = vunpack.c.l.b16 %v469
        %v486 = vunpack.c.l.b16 %v470
        %v487 = vunpack.c.l.b16 %v471
        %v488 = vunpack.c.l.b16 %v472
        %v489 = vunpack.c.l.b16 %v473
        %v490 = vunpack.c.l.b16 %v474
        %v491 = vpack.c.b16 %v484, %v483
        %v492 = vpack.c.b16 %v486, %v485
        %v493 = vpack.c.b16 %v488, %v487
        %v494 = vpack.c.b16 %v490, %v489
        %vm499 = vcmask 523264
        %v500 = vsel %vm499, %v341, 0
        %v502 = vsel %vm499, %v342, 0
        %v504 = vsel %vm499, %v343, 0
        %v506 = vsel %vm499, %v344, 0
        %v508 = vsel %vm499, %v345, 0
        %v510 = vsel %vm499, %v346, 0
        %v512 = vsel %vm499, %v347, 0
        %v514 = vsel %vm499, %v348, 0
        %516 = vmatpush.bf16.msra.mxu0 0
        %517 = vmatpush.bf16.msra.mxu0 0
        %518 = vmatpush.bf16.msra.mxu0 0
        %519 = vmatpush.bf16.msra.mxu0 0
        %520 = vmatpush.bf16.msra.mxu0 %v494
        %521 = vmatpush.bf16.msra.mxu0 %v493
        %522 = vmatpush.bf16.msra.mxu0 %v492
        %523 = vmatpush.bf16.msra.mxu0 %v491
        %524 = vmatmul.bf16.gmra.mxu0 %v500
        %v525 = vpop.f32.mrf.mxu0
        %v526 = vadd.f32 0.0, %v525
        %v527 = vpop.f32.mrf.mxu0
        %v528 = vadd.f32 0.0, %v527
        %529 = vmatmul.bf16.gmra.mxu0 %v502
        %v530 = vpop.f32.mrf.mxu0
        %v531 = vadd.f32 0.0, %v530
        %v532 = vpop.f32.mrf.mxu0
        %v533 = vadd.f32 0.0, %v532
        %534 = vmatmul.bf16.gmra.mxu0 %v504
        %v535 = vpop.f32.mrf.mxu0
        %v536 = vadd.f32 0.0, %v535
        %v537 = vpop.f32.mrf.mxu0
        %v538 = vadd.f32 0.0, %v537
        %539 = vmatmul.bf16.gmra.mxu0 %v506
        %v540 = vpop.f32.mrf.mxu0
        %v541 = vadd.f32 0.0, %v540
        %v542 = vpop.f32.mrf.mxu0
        %v543 = vadd.f32 0.0, %v542
        %544 = vmatmul.bf16.gmra.mxu0 %v508
        %v545 = vpop.f32.mrf.mxu0
        %v546 = vadd.f32 0.0, %v545
        %v547 = vpop.f32.mrf.mxu0
        %v548 = vadd.f32 0.0, %v547
        %549 = vmatmul.bf16.gmra.mxu0 %v510
        %v550 = vpop.f32.mrf.mxu0
        %v551 = vadd.f32 0.0, %v550
        %v552 = vpop.f32.mrf.mxu0
        %v553 = vadd.f32 0.0, %v552
        %554 = vmatmul.bf16.gmra.mxu0 %v512
        %v555 = vpop.f32.mrf.mxu0
        %v556 = vadd.f32 0.0, %v555
        %v557 = vpop.f32.mrf.mxu0
        %v558 = vadd.f32 0.0, %v557
        %559 = vmatmul.bf16.gmra.mxu0 %v514
        %v560 = vpop.f32.mrf.mxu0
        %v561 = vpop.f32.mrf.mxu0
        %562 = vdwg.mxu0
        %v571 = vunpack.c.l.b16 %v459
        %v572 = vunpack.c.l.b16 %v460
        %v573 = vunpack.c.l.b16 %v461
        %v574 = vunpack.c.l.b16 %v462
        %v575 = vunpack.c.l.b16 %v463
        %v576 = vunpack.c.l.b16 %v464
        %v577 = vunpack.c.l.b16 %v465
        %v578 = vunpack.c.l.b16 %v466
        %v579 = vpack.c.b16 %v572, %v571
        %v580 = vpack.c.b16 %v574, %v573
        %v581 = vpack.c.b16 %v576, %v575
        %v582 = vpack.c.b16 %v578, %v577
        %v588 = vsel %vm499, %v416, 0
        %v591 = vsel %vm499, %v417, 0
        %v594 = vsel %vm499, %v418, 0
        %v597 = vsel %vm499, %v419, 0
        %v600 = vsel %vm499, %v420, 0
        %v603 = vsel %vm499, %v421, 0
        %v606 = vsel %vm499, %v422, 0
        %v609 = vsel %vm499, %v423, 0
        %611 = vmatpush.bf16.msra.mxu0 0
        %612 = vmatpush.bf16.msra.mxu0 0
        %613 = vmatpush.bf16.msra.mxu0 0
        %614 = vmatpush.bf16.msra.mxu0 0
        %615 = vmatpush.bf16.msra.mxu0 %v582
        %616 = vmatpush.bf16.msra.mxu0 %v581
        %617 = vmatpush.bf16.msra.mxu0 %v580
        %618 = vmatpush.bf16.msra.mxu0 %v579
        %619 = vmatmul.bf16.gmra.mxu0 %v588
        %v620 = vpop.f32.mrf.mxu0
        %v621 = vadd.f32 %v526, %v620
        %v622 = vpop.f32.mrf.mxu0
        %v623 = vadd.f32 %v528, %v622
        %624 = vmatmul.bf16.gmra.mxu0 %v591
        %v625 = vpop.f32.mrf.mxu0
        %v626 = vadd.f32 %v531, %v625
        %v627 = vpop.f32.mrf.mxu0
        %v628 = vadd.f32 %v533, %v627
        %629 = vmatmul.bf16.gmra.mxu0 %v594
        %v630 = vpop.f32.mrf.mxu0
        %v631 = vadd.f32 %v536, %v630
        %v632 = vpop.f32.mrf.mxu0
        %v633 = vadd.f32 %v538, %v632
        %634 = vmatmul.bf16.gmra.mxu0 %v597
        %v635 = vpop.f32.mrf.mxu0
        %v636 = vadd.f32 %v541, %v635
        %v637 = vpop.f32.mrf.mxu0
        %v638 = vadd.f32 %v543, %v637
        %639 = vmatmul.bf16.gmra.mxu0 %v600
        %v640 = vpop.f32.mrf.mxu0
        %v641 = vadd.f32 %v546, %v640
        %v642 = vpop.f32.mrf.mxu0
        %v643 = vadd.f32 %v548, %v642
        %644 = vmatmul.bf16.gmra.mxu0 %v603
        %v645 = vpop.f32.mrf.mxu0
        %v646 = vadd.f32 %v551, %v645
        %v647 = vpop.f32.mrf.mxu0
        %v648 = vadd.f32 %v553, %v647
        %649 = vmatmul.bf16.gmra.mxu0 %v606
        %v650 = vpop.f32.mrf.mxu0
        %v651 = vadd.f32 %v556, %v650
        %v652 = vpop.f32.mrf.mxu0
        %v653 = vadd.f32 %v558, %v652
        %654 = vmatmul.bf16.gmra.mxu0 %v609
        %v655 = vpop.f32.mrf.mxu0
        %v656 = vpop.f32.mrf.mxu0
        %657 = vdwg.mxu0
        %v658 = vld [vmem:[%s1 + $0x40] sm:$0xf]
        %v659 = vld [vmem:[%s1 + $0x44] sm:$0xf]
        %v660 = vld [vmem:[%s1 + $0x48] sm:$0xf]
        %v661 = vld [vmem:[%s1 + $0x4c] sm:$0xf]
        %v662 = vld [vmem:[%s1 + $0x50] sm:$0xf]
        %v663 = vld [vmem:[%s1 + $0x54] sm:$0xf]
        %v664 = vld [vmem:[%s1 + $0x58] sm:$0xf]
        %v665 = vld [vmem:[%s1 + $0x5c] sm:$0xf]
        %v674 = vunpack.c.l.b16 %v658
        %v675 = vunpack.c.l.b16 %v659
        %v676 = vunpack.c.l.b16 %v660
        %v677 = vunpack.c.l.b16 %v661
        %v678 = vunpack.c.l.b16 %v662
        %v679 = vunpack.c.l.b16 %v663
        %v680 = vunpack.c.l.b16 %v664
        %v681 = vunpack.c.l.b16 %v665
        %v682 = vpack.c.b16 %v675, %v674
        %v683 = vpack.c.b16 %v677, %v676
        %v684 = vpack.c.b16 %v679, %v678
        %v685 = vpack.c.b16 %v681, %v680
        %v691 = vsel %vm499, %v451, 0
        %v694 = vsel %vm499, %v452, 0
        %v697 = vsel %vm499, %v453, 0
        %v700 = vsel %vm499, %v454, 0
        %v703 = vsel %vm499, %v455, 0
        %v706 = vsel %vm499, %v456, 0
        %v709 = vsel %vm499, %v457, 0
        %v712 = vsel %vm499, %v458, 0
        %714 = vmatpush.bf16.msra.mxu0 0
        %715 = vmatpush.bf16.msra.mxu0 0
        %716 = vmatpush.bf16.msra.mxu0 0
        %717 = vmatpush.bf16.msra.mxu0 0
        %718 = vmatpush.bf16.msra.mxu0 %v685
        %719 = vmatpush.bf16.msra.mxu0 %v684
        %720 = vmatpush.bf16.msra.mxu0 %v683
        %721 = vmatpush.bf16.msra.mxu0 %v682
        %722 = vmatmul.bf16.gmra.mxu0 %v691
        %v723 = vpop.f32.mrf.mxu0
        %v724 = vadd.f32 0.0, %v723
        %v725 = vpop.f32.mrf.mxu0
        %v726 = vadd.f32 0.0, %v725
        %727 = vmatmul.bf16.gmra.mxu0 %v694
        %v728 = vpop.f32.mrf.mxu0
        %v729 = vadd.f32 0.0, %v728
        %v730 = vpop.f32.mrf.mxu0
        %v731 = vadd.f32 0.0, %v730
        %732 = vmatmul.bf16.gmra.mxu0 %v697
        %v733 = vpop.f32.mrf.mxu0
        %v734 = vadd.f32 0.0, %v733
        %v735 = vpop.f32.mrf.mxu0
        %v736 = vadd.f32 0.0, %v735
        %737 = vmatmul.bf16.gmra.mxu0 %v700
        %v738 = vpop.f32.mrf.mxu0
        %v739 = vadd.f32 0.0, %v738
        %v740 = vpop.f32.mrf.mxu0
        %v741 = vadd.f32 0.0, %v740
        %742 = vmatmul.bf16.gmra.mxu0 %v703
        %v743 = vpop.f32.mrf.mxu0
        %v744 = vadd.f32 0.0, %v743
        %v745 = vpop.f32.mrf.mxu0
        %v746 = vadd.f32 0.0, %v745
        %747 = vmatmul.bf16.gmra.mxu0 %v706
        %v748 = vpop.f32.mrf.mxu0
        %v749 = vadd.f32 0.0, %v748
        %v750 = vpop.f32.mrf.mxu0
        %v751 = vadd.f32 0.0, %v750
        %752 = vmatmul.bf16.gmra.mxu0 %v709
        %v753 = vpop.f32.mrf.mxu0
        %v754 = vadd.f32 0.0, %v753
        %v755 = vpop.f32.mrf.mxu0
        %v756 = vadd.f32 0.0, %v755
        %757 = vmatmul.bf16.gmra.mxu0 %v712
        %v758 = vpop.f32.mrf.mxu0
        %v759 = vpop.f32.mrf.mxu0
        %760 = vdwg.mxu0
        %v761 = vadd.f32 %v621, %v724
        %v762 = vadd.f32 %v623, %v726
        %v763 = vadd.f32 %v626, %v729
        %v764 = vadd.f32 %v628, %v731
        %v765 = vadd.f32 %v631, %v734
        %v766 = vadd.f32 %v633, %v736
        %v767 = vadd.f32 %v636, %v739
        %v768 = vadd.f32 %v638, %v741
        %v769 = vadd.f32 %v641, %v744
        %v770 = vadd.f32 %v643, %v746
        %v771 = vadd.f32 %v646, %v749
        %v772 = vadd.f32 %v648, %v751
        %v773 = vadd.f32 %v651, %v754
        %v774 = vadd.f32 %v653, %v756
        %v775 = vld [vmem:[%s1 + $0x60] sm:$0xf]
        %v776 = vld [vmem:[%s1 + $0x64] sm:$0xf]
        %v777 = vld [vmem:[%s1 + $0x68] sm:$0xf]
        %v778 = vld [vmem:[%s1 + $0x6c] sm:$0xf]
        %v779 = vld [vmem:[%s1 + $0x70] sm:$0xf]
        %v780 = vld [vmem:[%s1 + $0x74] sm:$0xf]
        %v781 = vld [vmem:[%s1 + $0x78] sm:$0xf]
        %v782 = vld [vmem:[%s1 + $0x7c] sm:$0xf]
        %v783 = vld [vmem:[%s1 + $0x80] sm:$0xf]
        %v784 = vld [vmem:[%s1 + $0x84] sm:$0xf]
        %v785 = vld [vmem:[%s1 + $0x88] sm:$0xf]
        %v786 = vld [vmem:[%s1 + $0x8c] sm:$0xf]
        %v787 = vld [vmem:[%s1 + $0x90] sm:$0xf]
        %v788 = vld [vmem:[%s1 + $0x94] sm:$0xf]
        %v789 = vld [vmem:[%s1 + $0x98] sm:$0xf]
        %v790 = vld [vmem:[%s1 + $0x9c] sm:$0xf]
        %v799 = vunpack.c.l.b16 %v783
        %v800 = vunpack.c.l.b16 %v784
        %v801 = vunpack.c.l.b16 %v785
        %v802 = vunpack.c.l.b16 %v786
        %v803 = vunpack.c.l.b16 %v787
        %v804 = vunpack.c.l.b16 %v788
        %v805 = vunpack.c.l.b16 %v789
        %v806 = vunpack.c.l.b16 %v790
        %v807 = vpack.c.b16 %v800, %v799
        %v808 = vpack.c.b16 %v802, %v801
        %v809 = vpack.c.b16 %v804, %v803
        %v810 = vpack.c.b16 %v806, %v805
        %815 = vmatpush.bf16.msra.mxu0 0
        %816 = vmatpush.bf16.msra.mxu0 0
        %817 = vmatpush.bf16.msra.mxu0 0
        %818 = vmatpush.bf16.msra.mxu0 0
        %819 = vmatpush.bf16.msra.mxu0 %v810
        %820 = vmatpush.bf16.msra.mxu0 %v809
        %821 = vmatpush.bf16.msra.mxu0 %v808
        %822 = vmatpush.bf16.msra.mxu0 %v807
        %823 = vmatmul.bf16.gmra.mxu0 %v500
        %v824 = vpop.f32.mrf.mxu0
        %v825 = vadd.f32 0.0, %v824
        %v826 = vpop.f32.mrf.mxu0
        %v827 = vadd.f32 0.0, %v826
        %828 = vmatmul.bf16.gmra.mxu0 %v502
        %v829 = vpop.f32.mrf.mxu0
        %v830 = vadd.f32 0.0, %v829
        %v831 = vpop.f32.mrf.mxu0
        %v832 = vadd.f32 0.0, %v831
        %833 = vmatmul.bf16.gmra.mxu0 %v504
        %v834 = vpop.f32.mrf.mxu0
        %v835 = vadd.f32 0.0, %v834
        %v836 = vpop.f32.mrf.mxu0
        %v837 = vadd.f32 0.0, %v836
        %838 = vmatmul.bf16.gmra.mxu0 %v506
        %v839 = vpop.f32.mrf.mxu0
        %v840 = vadd.f32 0.0, %v839
        %v841 = vpop.f32.mrf.mxu0
        %v842 = vadd.f32 0.0, %v841
        %843 = vmatmul.bf16.gmra.mxu0 %v508
        %v844 = vpop.f32.mrf.mxu0
        %v845 = vadd.f32 0.0, %v844
        %v846 = vpop.f32.mrf.mxu0
        %v847 = vadd.f32 0.0, %v846
        %848 = vmatmul.bf16.gmra.mxu0 %v510
        %v849 = vpop.f32.mrf.mxu0
        %v850 = vadd.f32 0.0, %v849
        %v851 = vpop.f32.mrf.mxu0
        %v852 = vadd.f32 0.0, %v851
        %853 = vmatmul.bf16.gmra.mxu0 %v512
        %v854 = vpop.f32.mrf.mxu0
        %v855 = vadd.f32 0.0, %v854
        %v856 = vpop.f32.mrf.mxu0
        %v857 = vadd.f32 0.0, %v856
        %858 = vmatmul.bf16.gmra.mxu0 %v514
        %v859 = vpop.f32.mrf.mxu0
        %v860 = vadd.f32 0.0, %v859
        %v861 = vpop.f32.mrf.mxu0
        %v862 = vadd.f32 0.0, %v861
        %863 = vdwg.mxu0
        %v872 = vunpack.c.l.b16 %v775
        %v873 = vunpack.c.l.b16 %v776
        %v874 = vunpack.c.l.b16 %v777
        %v875 = vunpack.c.l.b16 %v778
        %v876 = vunpack.c.l.b16 %v779
        %v877 = vunpack.c.l.b16 %v780
        %v878 = vunpack.c.l.b16 %v781
        %v879 = vunpack.c.l.b16 %v782
        %v880 = vpack.c.b16 %v873, %v872
        %v881 = vpack.c.b16 %v875, %v874
        %v882 = vpack.c.b16 %v877, %v876
        %v883 = vpack.c.b16 %v879, %v878
        %888 = vmatpush.bf16.msra.mxu0 0
        %889 = vmatpush.bf16.msra.mxu0 0
        %890 = vmatpush.bf16.msra.mxu0 0
        %891 = vmatpush.bf16.msra.mxu0 0
        %892 = vmatpush.bf16.msra.mxu0 %v883
        %893 = vmatpush.bf16.msra.mxu0 %v882
        %894 = vmatpush.bf16.msra.mxu0 %v881
        %895 = vmatpush.bf16.msra.mxu0 %v880
        %896 = vmatmul.bf16.gmra.mxu0 %v588
        %v897 = vpop.f32.mrf.mxu0
        %v898 = vadd.f32 %v825, %v897
        %v899 = vpop.f32.mrf.mxu0
        %v900 = vadd.f32 %v827, %v899
        %901 = vmatmul.bf16.gmra.mxu0 %v591
        %v902 = vpop.f32.mrf.mxu0
        %v903 = vadd.f32 %v830, %v902
        %v904 = vpop.f32.mrf.mxu0
        %v905 = vadd.f32 %v832, %v904
        %906 = vmatmul.bf16.gmra.mxu0 %v594
        %v907 = vpop.f32.mrf.mxu0
        %v908 = vadd.f32 %v835, %v907
        %v909 = vpop.f32.mrf.mxu0
        %v910 = vadd.f32 %v837, %v909
        %911 = vmatmul.bf16.gmra.mxu0 %v597
        %v912 = vpop.f32.mrf.mxu0
        %v913 = vadd.f32 %v840, %v912
        %v914 = vpop.f32.mrf.mxu0
        %v915 = vadd.f32 %v842, %v914
        %916 = vmatmul.bf16.gmra.mxu0 %v600
        %v917 = vpop.f32.mrf.mxu0
        %v918 = vadd.f32 %v845, %v917
        %v919 = vpop.f32.mrf.mxu0
        %v920 = vadd.f32 %v847, %v919
        %921 = vmatmul.bf16.gmra.mxu0 %v603
        %v922 = vpop.f32.mrf.mxu0
        %v923 = vadd.f32 %v850, %v922
        %v924 = vpop.f32.mrf.mxu0
        %v925 = vadd.f32 %v852, %v924
        %926 = vmatmul.bf16.gmra.mxu0 %v606
        %v927 = vpop.f32.mrf.mxu0
        %v928 = vadd.f32 %v855, %v927
        %v929 = vpop.f32.mrf.mxu0
        %v930 = vadd.f32 %v857, %v929
        %931 = vmatmul.bf16.gmra.mxu0 %v609
        %v932 = vpop.f32.mrf.mxu0
        %v933 = vadd.f32 %v860, %v932
        %v934 = vpop.f32.mrf.mxu0
        %v935 = vadd.f32 %v862, %v934
        %936 = vdwg.mxu0
        %v937 = vld [vmem:[%s1 + $0xa0] sm:$0xf]
        %v938 = vld [vmem:[%s1 + $0xa4] sm:$0xf]
        %v939 = vld [vmem:[%s1 + $0xa8] sm:$0xf]
        %v940 = vld [vmem:[%s1 + $0xac] sm:$0xf]
        %v941 = vld [vmem:[%s1 + $0xb0] sm:$0xf]
        %v942 = vld [vmem:[%s1 + $0xb4] sm:$0xf]
        %v943 = vld [vmem:[%s1 + $0xb8] sm:$0xf]
        %v944 = vld [vmem:[%s1 + $0xbc] sm:$0xf]
        %v953 = vunpack.c.l.b16 %v937
        %v954 = vunpack.c.l.b16 %v938
        %v955 = vunpack.c.l.b16 %v939
        %v956 = vunpack.c.l.b16 %v940
        %v957 = vunpack.c.l.b16 %v941
        %v958 = vunpack.c.l.b16 %v942
        %v959 = vunpack.c.l.b16 %v943
        %v960 = vunpack.c.l.b16 %v944
        %v961 = vpack.c.b16 %v954, %v953
        %v962 = vpack.c.b16 %v956, %v955
        %v963 = vpack.c.b16 %v958, %v957
        %v964 = vpack.c.b16 %v960, %v959
        %969 = vmatpush.bf16.msra.mxu0 0
        %970 = vmatpush.bf16.msra.mxu0 0
        %971 = vmatpush.bf16.msra.mxu0 0
        %972 = vmatpush.bf16.msra.mxu0 0
        %973 = vmatpush.bf16.msra.mxu0 %v964
        %974 = vmatpush.bf16.msra.mxu0 %v963
        %975 = vmatpush.bf16.msra.mxu0 %v962
        %976 = vmatpush.bf16.msra.mxu0 %v961
        %977 = vmatmul.bf16.gmra.mxu0 %v691
        %v978 = vpop.f32.mrf.mxu0
        %v979 = vadd.f32 0.0, %v978
        %v980 = vpop.f32.mrf.mxu0
        %v981 = vadd.f32 0.0, %v980
        %982 = vmatmul.bf16.gmra.mxu0 %v694
        %v983 = vpop.f32.mrf.mxu0
        %v984 = vadd.f32 0.0, %v983
        %v985 = vpop.f32.mrf.mxu0
        %v986 = vadd.f32 0.0, %v985
        %987 = vmatmul.bf16.gmra.mxu0 %v697
        %v988 = vpop.f32.mrf.mxu0
        %v989 = vadd.f32 0.0, %v988
        %v990 = vpop.f32.mrf.mxu0
        %v991 = vadd.f32 0.0, %v990
        %992 = vmatmul.bf16.gmra.mxu0 %v700
        %v993 = vpop.f32.mrf.mxu0
        %v994 = vadd.f32 0.0, %v993
        %v995 = vpop.f32.mrf.mxu0
        %v996 = vadd.f32 0.0, %v995
        %997 = vmatmul.bf16.gmra.mxu0 %v703
        %v998 = vpop.f32.mrf.mxu0
        %v999 = vadd.f32 0.0, %v998
        %v1000 = vpop.f32.mrf.mxu0
        %v1001 = vadd.f32 0.0, %v1000
        %1002 = vmatmul.bf16.gmra.mxu0 %v706
        %v1003 = vpop.f32.mrf.mxu0
        %v1004 = vadd.f32 0.0, %v1003
        %v1005 = vpop.f32.mrf.mxu0
        %v1006 = vadd.f32 0.0, %v1005
        %1007 = vmatmul.bf16.gmra.mxu0 %v709
        %v1008 = vpop.f32.mrf.mxu0
        %v1009 = vadd.f32 0.0, %v1008
        %v1010 = vpop.f32.mrf.mxu0
        %v1011 = vadd.f32 0.0, %v1010
        %1012 = vmatmul.bf16.gmra.mxu0 %v712
        %v1013 = vpop.f32.mrf.mxu0
        %v1014 = vadd.f32 0.0, %v1013
        %v1015 = vpop.f32.mrf.mxu0
        %v1016 = vadd.f32 0.0, %v1015
        %1017 = vdwg.mxu0
        %v1018 = vadd.f32 %v898, %v979
        %v1019 = vadd.f32 %v900, %v981
        %v1020 = vadd.f32 %v903, %v984
        %v1021 = vadd.f32 %v905, %v986
        %v1022 = vadd.f32 %v908, %v989
        %v1023 = vadd.f32 %v910, %v991
        %v1024 = vadd.f32 %v913, %v994
        %v1025 = vadd.f32 %v915, %v996
        %v1026 = vadd.f32 %v918, %v999
        %v1027 = vadd.f32 %v920, %v1001
        %v1028 = vadd.f32 %v923, %v1004
        %v1029 = vadd.f32 %v925, %v1006
        %v1030 = vadd.f32 %v928, %v1009
        %v1031 = vadd.f32 %v930, %v1011
        %v1032 = vadd.f32 %v933, %v1014
        %v1033 = vadd.f32 %v935, %v1016
        %v1034 = vld [vmem:[%s1 + $0xc0] sm:$0xf]
        %v1035 = vld [vmem:[%s1 + $0xc4] sm:$0xf]
        %v1036 = vld [vmem:[%s1 + $0xc8] sm:$0xf]
        %v1037 = vld [vmem:[%s1 + $0xcc] sm:$0xf]
        %v1038 = vld [vmem:[%s1 + $0xd0] sm:$0xf]
        %v1039 = vld [vmem:[%s1 + $0xd4] sm:$0xf]
        %v1040 = vld [vmem:[%s1 + $0xd8] sm:$0xf]
        %v1041 = vld [vmem:[%s1 + $0xdc] sm:$0xf]
        %v1042 = vld [vmem:[%s1 + $0xe0] sm:$0xf]
        %v1043 = vld [vmem:[%s1 + $0xe4] sm:$0xf]
        %v1044 = vld [vmem:[%s1 + $0xe8] sm:$0xf]
        %v1045 = vld [vmem:[%s1 + $0xec] sm:$0xf]
        %v1046 = vld [vmem:[%s1 + $0xf0] sm:$0xf]
        %v1047 = vld [vmem:[%s1 + $0xf4] sm:$0xf]
        %v1048 = vld [vmem:[%s1 + $0xf8] sm:$0xf]
        %v1049 = vld [vmem:[%s1 + $0xfc] sm:$0xf]
        %v1058 = vunpack.c.l.b16 %v1042
        %v1059 = vunpack.c.l.b16 %v1043
        %v1060 = vunpack.c.l.b16 %v1044
        %v1061 = vunpack.c.l.b16 %v1045
        %v1062 = vunpack.c.l.b16 %v1046
        %v1063 = vunpack.c.l.b16 %v1047
        %v1064 = vunpack.c.l.b16 %v1048
        %v1065 = vunpack.c.l.b16 %v1049
        %v1066 = vpack.c.b16 %v1059, %v1058
        %v1067 = vpack.c.b16 %v1061, %v1060
        %v1068 = vpack.c.b16 %v1063, %v1062
        %v1069 = vpack.c.b16 %v1065, %v1064
        %1074 = vmatpush.bf16.msra.mxu0 0
        %1075 = vmatpush.bf16.msra.mxu0 0
        %1076 = vmatpush.bf16.msra.mxu0 0
        %1077 = vmatpush.bf16.msra.mxu0 0
        %1078 = vmatpush.bf16.msra.mxu0 %v1069
        %1079 = vmatpush.bf16.msra.mxu0 %v1068
        %1080 = vmatpush.bf16.msra.mxu0 %v1067
        %1081 = vmatpush.bf16.msra.mxu0 %v1066
        %1082 = vmatmul.bf16.gmra.mxu0 %v500
        %v1083 = vpop.f32.mrf.mxu0
        %v1084 = vpop.f32.mrf.mxu0
        %1085 = vmatmul.bf16.gmra.mxu0 %v502
        %v1086 = vpop.f32.mrf.mxu0
        %v1087 = vadd.f32 0.0, %v1086
        %v1088 = vpop.f32.mrf.mxu0
        %v1089 = vadd.f32 0.0, %v1088
        %1090 = vmatmul.bf16.gmra.mxu0 %v504
        %v1091 = vpop.f32.mrf.mxu0
        %v1092 = vadd.f32 0.0, %v1091
        %v1093 = vpop.f32.mrf.mxu0
        %v1094 = vadd.f32 0.0, %v1093
        %1095 = vmatmul.bf16.gmra.mxu0 %v506
        %v1096 = vpop.f32.mrf.mxu0
        %v1097 = vadd.f32 0.0, %v1096
        %v1098 = vpop.f32.mrf.mxu0
        %v1099 = vadd.f32 0.0, %v1098
        %1100 = vmatmul.bf16.gmra.mxu0 %v508
        %v1101 = vpop.f32.mrf.mxu0
        %v1102 = vadd.f32 0.0, %v1101
        %v1103 = vpop.f32.mrf.mxu0
        %v1104 = vadd.f32 0.0, %v1103
        %1105 = vmatmul.bf16.gmra.mxu0 %v510
        %v1106 = vpop.f32.mrf.mxu0
        %v1107 = vadd.f32 0.0, %v1106
        %v1108 = vpop.f32.mrf.mxu0
        %v1109 = vadd.f32 0.0, %v1108
        %1110 = vmatmul.bf16.gmra.mxu0 %v512
        %v1111 = vpop.f32.mrf.mxu0
        %v1112 = vadd.f32 0.0, %v1111
        %v1113 = vpop.f32.mrf.mxu0
        %v1114 = vadd.f32 0.0, %v1113
        %1115 = vmatmul.bf16.gmra.mxu0 %v514
        %v1116 = vpop.f32.mrf.mxu0
        %v1117 = vadd.f32 0.0, %v1116
        %v1118 = vpop.f32.mrf.mxu0
        %v1119 = vadd.f32 0.0, %v1118
        %1120 = vdwg.mxu0
        %v1129 = vunpack.c.l.b16 %v1034
        %v1130 = vunpack.c.l.b16 %v1035
        %v1131 = vunpack.c.l.b16 %v1036
        %v1132 = vunpack.c.l.b16 %v1037
        %v1133 = vunpack.c.l.b16 %v1038
        %v1134 = vunpack.c.l.b16 %v1039
        %v1135 = vunpack.c.l.b16 %v1040
        %v1136 = vunpack.c.l.b16 %v1041
        %v1137 = vpack.c.b16 %v1130, %v1129
        %v1138 = vpack.c.b16 %v1132, %v1131
        %v1139 = vpack.c.b16 %v1134, %v1133
        %v1140 = vpack.c.b16 %v1136, %v1135
        %1145 = vmatpush.bf16.msra.mxu0 0
        %1146 = vmatpush.bf16.msra.mxu0 0
        %1147 = vmatpush.bf16.msra.mxu0 0
        %1148 = vmatpush.bf16.msra.mxu0 0
        %1149 = vmatpush.bf16.msra.mxu0 %v1140
        %1150 = vmatpush.bf16.msra.mxu0 %v1139
        %1151 = vmatpush.bf16.msra.mxu0 %v1138
        %1152 = vmatpush.bf16.msra.mxu0 %v1137
        %1153 = vmatmul.bf16.gmra.mxu0 %v588
        %v1154 = vpop.f32.mrf.mxu0
        %v1155 = vpop.f32.mrf.mxu0
        %1156 = vmatmul.bf16.gmra.mxu0 %v591
        %v1157 = vpop.f32.mrf.mxu0
        %v1158 = vadd.f32 %v1087, %v1157
        %v1159 = vpop.f32.mrf.mxu0
        %v1160 = vadd.f32 %v1089, %v1159
        %1161 = vmatmul.bf16.gmra.mxu0 %v594
        %v1162 = vpop.f32.mrf.mxu0
        %v1163 = vadd.f32 %v1092, %v1162
        %v1164 = vpop.f32.mrf.mxu0
        %v1165 = vadd.f32 %v1094, %v1164
        %1166 = vmatmul.bf16.gmra.mxu0 %v597
        %v1167 = vpop.f32.mrf.mxu0
        %v1168 = vadd.f32 %v1097, %v1167
        %v1169 = vpop.f32.mrf.mxu0
        %v1170 = vadd.f32 %v1099, %v1169
        %1171 = vmatmul.bf16.gmra.mxu0 %v600
        %v1172 = vpop.f32.mrf.mxu0
        %v1173 = vadd.f32 %v1102, %v1172
        %v1174 = vpop.f32.mrf.mxu0
        %v1175 = vadd.f32 %v1104, %v1174
        %1176 = vmatmul.bf16.gmra.mxu0 %v603
        %v1177 = vpop.f32.mrf.mxu0
        %v1178 = vadd.f32 %v1107, %v1177
        %v1179 = vpop.f32.mrf.mxu0
        %v1180 = vadd.f32 %v1109, %v1179
        %1181 = vmatmul.bf16.gmra.mxu0 %v606
        %v1182 = vpop.f32.mrf.mxu0
        %v1183 = vadd.f32 %v1112, %v1182
        %v1184 = vpop.f32.mrf.mxu0
        %v1185 = vadd.f32 %v1114, %v1184
        %1186 = vmatmul.bf16.gmra.mxu0 %v609
        %v1187 = vpop.f32.mrf.mxu0
        %v1188 = vadd.f32 %v1117, %v1187
        %v1189 = vpop.f32.mrf.mxu0
        %v1190 = vadd.f32 %v1119, %v1189
        %1191 = vdwg.mxu0
        %v1192 = vld [vmem:[%s1 + $0x100] sm:$0xf]
        %v1193 = vld [vmem:[%s1 + $0x104] sm:$0xf]
        %v1194 = vld [vmem:[%s1 + $0x108] sm:$0xf]
        %v1195 = vld [vmem:[%s1 + $0x10c] sm:$0xf]
        %v1196 = vld [vmem:[%s1 + $0x110] sm:$0xf]
        %v1197 = vld [vmem:[%s1 + $0x114] sm:$0xf]
        %v1198 = vld [vmem:[%s1 + $0x118] sm:$0xf]
        %v1199 = vld [vmem:[%s1 + $0x11c] sm:$0xf]
        %v1208 = vunpack.c.l.b16 %v1192
        %v1209 = vunpack.c.l.b16 %v1193
        %v1210 = vunpack.c.l.b16 %v1194
        %v1211 = vunpack.c.l.b16 %v1195
        %v1212 = vunpack.c.l.b16 %v1196
        %v1213 = vunpack.c.l.b16 %v1197
        %v1214 = vunpack.c.l.b16 %v1198
        %v1215 = vunpack.c.l.b16 %v1199
        %v1216 = vpack.c.b16 %v1209, %v1208
        %v1217 = vpack.c.b16 %v1211, %v1210
        %v1218 = vpack.c.b16 %v1213, %v1212
        %v1219 = vpack.c.b16 %v1215, %v1214
        %1224 = vmatpush.bf16.msra.mxu0 0
        %1225 = vmatpush.bf16.msra.mxu0 0
        %1226 = vmatpush.bf16.msra.mxu0 0
        %1227 = vmatpush.bf16.msra.mxu0 0
        %1228 = vmatpush.bf16.msra.mxu0 %v1219
        %1229 = vmatpush.bf16.msra.mxu0 %v1218
        %1230 = vmatpush.bf16.msra.mxu0 %v1217
        %1231 = vmatpush.bf16.msra.mxu0 %v1216
        %1232 = vmatmul.bf16.gmra.mxu0 %v691
        %v1233 = vpop.f32.mrf.mxu0
        %v1234 = vpop.f32.mrf.mxu0
        %1235 = vmatmul.bf16.gmra.mxu0 %v694
        %v1236 = vpop.f32.mrf.mxu0
        %v1237 = vadd.f32 0.0, %v1236
        %v1238 = vpop.f32.mrf.mxu0
        %v1239 = vadd.f32 0.0, %v1238
        %1240 = vmatmul.bf16.gmra.mxu0 %v697
        %v1241 = vpop.f32.mrf.mxu0
        %v1242 = vadd.f32 0.0, %v1241
        %v1243 = vpop.f32.mrf.mxu0
        %v1244 = vadd.f32 0.0, %v1243
        %1245 = vmatmul.bf16.gmra.mxu0 %v700
        %v1246 = vpop.f32.mrf.mxu0
        %v1247 = vadd.f32 0.0, %v1246
        %v1248 = vpop.f32.mrf.mxu0
        %v1249 = vadd.f32 0.0, %v1248
        %1250 = vmatmul.bf16.gmra.mxu0 %v703
        %v1251 = vpop.f32.mrf.mxu0
        %v1252 = vadd.f32 0.0, %v1251
        %v1253 = vpop.f32.mrf.mxu0
        %v1254 = vadd.f32 0.0, %v1253
        %1255 = vmatmul.bf16.gmra.mxu0 %v706
        %v1256 = vpop.f32.mrf.mxu0
        %v1257 = vadd.f32 0.0, %v1256
        %v1258 = vpop.f32.mrf.mxu0
        %v1259 = vadd.f32 0.0, %v1258
        %1260 = vmatmul.bf16.gmra.mxu0 %v709
        %v1261 = vpop.f32.mrf.mxu0
        %v1262 = vadd.f32 0.0, %v1261
        %v1263 = vpop.f32.mrf.mxu0
        %v1264 = vadd.f32 0.0, %v1263
        %1265 = vmatmul.bf16.gmra.mxu0 %v712
        %v1266 = vpop.f32.mrf.mxu0
        %v1267 = vadd.f32 0.0, %v1266
        %v1268 = vpop.f32.mrf.mxu0
        %v1269 = vadd.f32 0.0, %v1268
        %1270 = vdwg.mxu0
        %v1271 = vadd.f32 %v1158, %v1237
        %v1272 = vadd.f32 %v1160, %v1239
        %v1273 = vadd.f32 %v1163, %v1242
        %v1274 = vadd.f32 %v1165, %v1244
        %v1275 = vadd.f32 %v1168, %v1247
        %v1276 = vadd.f32 %v1170, %v1249
        %v1277 = vadd.f32 %v1173, %v1252
        %v1278 = vadd.f32 %v1175, %v1254
        %v1279 = vadd.f32 %v1178, %v1257
        %v1280 = vadd.f32 %v1180, %v1259
        %v1281 = vadd.f32 %v1183, %v1262
        %v1282 = vadd.f32 %v1185, %v1264
        %v1283 = vadd.f32 %v1188, %v1267
        %v1284 = vadd.f32 %v1190, %v1269
        %v1285 = vadd.f32 %v1018, 0.0
        %v1286 = vadd.f32 %v1019, 0.0
        %v1287 = vadd.f32 %v1020, %v761
        %v1288 = vadd.f32 %v1021, %v762
        %v1289 = vadd.f32 %v1022, %v763
        %v1290 = vadd.f32 %v1023, %v764
        %v1291 = vadd.f32 %v1024, %v765
        %v1292 = vadd.f32 %v1025, %v766
        %v1293 = vadd.f32 %v1026, %v767
        %v1294 = vadd.f32 %v1027, %v768
        %v1295 = vadd.f32 %v1028, %v769
        %v1296 = vadd.f32 %v1029, %v770
        %v1297 = vadd.f32 %v1030, %v771
        %v1298 = vadd.f32 %v1031, %v772
        %v1299 = vadd.f32 %v1032, %v773
        %v1300 = vadd.f32 %v1033, %v774
        %v1301 = vadd.f32 %v1285, %v1271
        %v1302 = vadd.f32 %v1286, %v1272
        %v1303 = vadd.f32 %v1287, %v1273
        %v1304 = vadd.f32 %v1288, %v1274
        %v1305 = vadd.f32 %v1289, %v1275
        %v1306 = vadd.f32 %v1290, %v1276
        %v1307 = vadd.f32 %v1291, %v1277
        %v1308 = vadd.f32 %v1292, %v1278
        %v1309 = vadd.f32 %v1293, %v1279
        %v1310 = vadd.f32 %v1294, %v1280
        %v1311 = vadd.f32 %v1295, %v1281
        %v1312 = vadd.f32 %v1296, %v1282
        %v1313 = vadd.f32 %v1297, %v1283
        %v1314 = vadd.f32 %v1298, %v1284
        %v1315 = vadd.f32 %v1299, 0.0
        %v1316 = vadd.f32 %v1300, 0.0
        %v1317 = vld [vmem:[#allocation4] sm:$0x1]
        %v1319 = vperm.slane %v1317, 0
        %v1321 = vadd.f32 %v1301, %v1319
        %v1322 = vadd.f32 %v1302, %v1319
        %v1323 = vadd.f32 %v1303, %v1319
        %v1324 = vadd.f32 %v1304, %v1319
        %v1325 = vadd.f32 %v1305, %v1319
        %v1326 = vadd.f32 %v1306, %v1319
        %v1327 = vadd.f32 %v1307, %v1319
        %v1328 = vadd.f32 %v1308, %v1319
        %v1329 = vadd.f32 %v1309, %v1319
        %v1330 = vadd.f32 %v1310, %v1319
        %v1331 = vadd.f32 %v1311, %v1319
        %v1332 = vadd.f32 %v1312, %v1319
        %v1333 = vadd.f32 %v1313, %v1319
        %v1334 = vadd.f32 %v1314, %v1319
        %v1335 = vadd.f32 %v1315, %v1319
        %v1336 = vadd.f32 %v1316, %v1319
        %vm1337 = vcmp.ge.f32.partialorder %v1321, 0.0
        %vm1338 = vcmp.ge.f32.partialorder %v1322, 0.0
        %vm1339 = vcmp.ge.f32.partialorder %v1323, 0.0
        %vm1340 = vcmp.ge.f32.partialorder %v1324, 0.0
        %vm1341 = vcmp.ge.f32.partialorder %v1325, 0.0
        %vm1342 = vcmp.ge.f32.partialorder %v1326, 0.0
        %vm1343 = vcmp.ge.f32.partialorder %v1327, 0.0
        %vm1344 = vcmp.ge.f32.partialorder %v1328, 0.0
        %vm1345 = vcmp.ge.f32.partialorder %v1329, 0.0
        %vm1346 = vcmp.ge.f32.partialorder %v1330, 0.0
        %vm1347 = vcmp.ge.f32.partialorder %v1331, 0.0
        %vm1348 = vcmp.ge.f32.partialorder %v1332, 0.0
        %vm1349 = vcmp.ge.f32.partialorder %v1333, 0.0
        %vm1350 = vcmp.ge.f32.partialorder %v1334, 0.0
        %vm1351 = vcmp.ge.f32.partialorder %v1335, 0.0
        %vm1352 = vcmp.ge.f32.partialorder %v1336, 0.0
        %v1353 = vmul.f32 %v1321, 0.2
        %v1354 = vmul.f32 %v1322, 0.2
        %v1355 = vmul.f32 %v1323, 0.2
        %v1356 = vmul.f32 %v1324, 0.2
        %v1357 = vmul.f32 %v1325, 0.2
        %v1358 = vmul.f32 %v1326, 0.2
        %v1359 = vmul.f32 %v1327, 0.2
        %v1360 = vmul.f32 %v1328, 0.2
        %v1361 = vmul.f32 %v1329, 0.2
        %v1362 = vmul.f32 %v1330, 0.2
        %v1363 = vmul.f32 %v1331, 0.2
        %v1364 = vmul.f32 %v1332, 0.2
        %v1365 = vmul.f32 %v1333, 0.2
        %v1366 = vmul.f32 %v1334, 0.2
        %v1367 = vmul.f32 %v1335, 0.2
        %v1368 = vmul.f32 %v1336, 0.2
        %v1369 = vsel %vm1337, %v1321, %v1353
        %v1370 = vsel %vm1338, %v1322, %v1354
        %v1371 = vsel %vm1339, %v1323, %v1355
        %v1372 = vsel %vm1340, %v1324, %v1356
        %v1373 = vsel %vm1341, %v1325, %v1357
        %v1374 = vsel %vm1342, %v1326, %v1358
        %v1375 = vsel %vm1343, %v1327, %v1359
        %v1376 = vsel %vm1344, %v1328, %v1360
        %v1377 = vsel %vm1345, %v1329, %v1361
        %v1378 = vsel %vm1346, %v1330, %v1362
        %v1379 = vsel %vm1347, %v1331, %v1363
        %v1380 = vsel %vm1348, %v1332, %v1364
        %v1381 = vsel %vm1349, %v1333, %v1365
        %v1382 = vsel %vm1350, %v1334, %v1366
        %v1383 = vsel %vm1351, %v1335, %v1367
        %v1384 = vsel %vm1352, %v1336, %v1368
        %v1385 = vpack.c.bf16 %v1369, %v1369
        %v1386 = vpack.c.bf16 %v1370, %v1370
        %v1387 = vpack.c.bf16 %v1371, %v1371
        %v1388 = vpack.c.bf16 %v1372, %v1372
        %v1389 = vpack.c.bf16 %v1373, %v1373
        %v1390 = vpack.c.bf16 %v1374, %v1374
        %v1391 = vpack.c.bf16 %v1375, %v1375
        %v1392 = vpack.c.bf16 %v1376, %v1376
        %v1393 = vpack.c.bf16 %v1377, %v1377
        %v1394 = vpack.c.bf16 %v1378, %v1378
        %v1395 = vpack.c.bf16 %v1379, %v1379
        %v1396 = vpack.c.bf16 %v1380, %v1380
        %v1397 = vpack.c.bf16 %v1381, %v1381
        %v1398 = vpack.c.bf16 %v1382, %v1382
        %v1399 = vpack.c.bf16 %v1383, %v1383
        %v1400 = vpack.c.bf16 %v1384, %v1384
        %v1417 = vunpack.c.l.b16 %v1385
        %v1418 = vunpack.c.l.b16 %v1386
        %v1419 = vunpack.c.l.b16 %v1387
        %v1420 = vunpack.c.l.b16 %v1388
        %v1421 = vunpack.c.l.b16 %v1389
        %v1422 = vunpack.c.l.b16 %v1390
        %v1423 = vunpack.c.l.b16 %v1391
        %v1424 = vunpack.c.l.b16 %v1392
        %v1425 = vunpack.c.l.b16 %v1393
        %v1426 = vunpack.c.l.b16 %v1394
        %v1427 = vunpack.c.l.b16 %v1395
        %v1428 = vunpack.c.l.b16 %v1396
        %v1429 = vunpack.c.l.b16 %v1397
        %v1430 = vunpack.c.l.b16 %v1398
        %v1431 = vunpack.c.l.b16 %v1399
        %v1432 = vunpack.c.l.b16 %v1400
        %v1433 = vpack.c.b16 %v1418, %v1417
        %v1434 = vpack.c.b16 %v1420, %v1419
        %v1435 = vpack.c.b16 %v1422, %v1421
        %v1436 = vpack.c.b16 %v1424, %v1423
        %v1437 = vpack.c.b16 %v1426, %v1425
        %v1438 = vpack.c.b16 %v1428, %v1427
        %v1439 = vpack.c.b16 %v1430, %v1429
        %v1440 = vpack.c.b16 %v1432, %v1431
        %v1442 = vshrl.u32 %v1433, 16
        %v1444 = vrot.slane %v1442, 7
        %v1445 = vshll.u32 %v1433, 16
        %v1447 = vor.u32 %v1444, %v1445
        %v1449 = vshrl.u32 %v1434, 16
        %v1451 = vrot.slane %v1449, 7
        %v1452 = vshll.u32 %v1434, 16
        %v1454 = vor.u32 %v1451, %v1452
        %v1456 = vshrl.u32 %v1435, 16
        %v1458 = vrot.slane %v1456, 7
        %v1459 = vshll.u32 %v1435, 16
        %v1461 = vor.u32 %v1458, %v1459
        %v1463 = vshrl.u32 %v1436, 16
        %v1465 = vrot.slane %v1463, 7
        %v1466 = vshll.u32 %v1436, 16
        %v1468 = vor.u32 %v1465, %v1466
        %v1470 = vshrl.u32 %v1437, 16
        %v1472 = vrot.slane %v1470, 7
        %v1473 = vshll.u32 %v1437, 16
        %v1475 = vor.u32 %v1472, %v1473
        %v1477 = vshrl.u32 %v1438, 16
        %v1479 = vrot.slane %v1477, 7
        %v1480 = vshll.u32 %v1438, 16
        %v1482 = vor.u32 %v1479, %v1480
        %v1484 = vshrl.u32 %v1439, 16
        %v1486 = vrot.slane %v1484, 7
        %v1487 = vshll.u32 %v1439, 16
        %v1489 = vor.u32 %v1486, %v1487
        %v1491 = vshrl.u32 %v1440, 16
        %v1493 = vrot.slane %v1491, 7
        %v1494 = vshll.u32 %v1440, 16
        %v1496 = vor.u32 %v1493, %v1494
        %v1505 = vsel %vm415, 0, %v1447
        %v1506 = vsel %vm415, 0, %v1454
        %v1507 = vsel %vm415, 0, %v1461
        %v1508 = vsel %vm415, 0, %v1468
        %v1509 = vsel %vm415, 0, %v1475
        %v1510 = vsel %vm415, 0, %v1482
        %v1511 = vsel %vm415, 0, %v1489
        %v1512 = vsel %vm415, 0, %v1496
        %v1513 = vrot.slane %v1445, 1
        %v1514 = vor.u32 %v1442, %v1513
        %v1515 = vrot.slane %v1452, 1
        %v1516 = vor.u32 %v1449, %v1515
        %v1517 = vrot.slane %v1459, 1
        %v1518 = vor.u32 %v1456, %v1517
        %v1519 = vrot.slane %v1466, 1
        %v1520 = vor.u32 %v1463, %v1519
        %v1521 = vrot.slane %v1473, 1
        %v1522 = vor.u32 %v1470, %v1521
        %v1523 = vrot.slane %v1480, 1
        %v1524 = vor.u32 %v1477, %v1523
        %v1525 = vrot.slane %v1487, 1
        %v1526 = vor.u32 %v1484, %v1525
        %v1527 = vrot.slane %v1494, 1
        %v1528 = vor.u32 %v1491, %v1527
        %v1537 = vsel %vm450, %v1514, 0
        %v1538 = vsel %vm450, %v1516, 0
        %v1539 = vsel %vm450, %v1518, 0
        %v1540 = vsel %vm450, %v1520, 0
        %v1541 = vsel %vm450, %v1522, 0
        %v1542 = vsel %vm450, %v1524, 0
        %v1543 = vsel %vm450, %v1526, 0
        %v1544 = vsel %vm450, %v1528, 0
        %v1545 = vld [vmem:[%s3] sm:$0xf]
        %v1546 = vld [vmem:[%s3 + $0x4] sm:$0xf]
        %v1547 = vld [vmem:[%s3 + $0x8] sm:$0xf]
        %v1548 = vld [vmem:[%s3 + $0xc] sm:$0xf]
        %v1549 = vld [vmem:[%s3 + $0x10] sm:$0xf]
        %v1550 = vld [vmem:[%s3 + $0x14] sm:$0xf]
        %v1551 = vld [vmem:[%s3 + $0x18] sm:$0xf]
        %v1552 = vld [vmem:[%s3 + $0x1c] sm:$0xf]
        %v1553 = vld [vmem:[%s3 + $0x20] sm:$0xf]
        %v1554 = vld [vmem:[%s3 + $0x24] sm:$0xf]
        %v1555 = vld [vmem:[%s3 + $0x28] sm:$0xf]
        %v1556 = vld [vmem:[%s3 + $0x2c] sm:$0xf]
        %v1563 = vunpack.c.l.b16 %v1551
        %v1564 = vunpack.c.l.b16 %v1552
        %v1565 = vunpack.c.l.b16 %v1553
        %v1566 = vunpack.c.l.b16 %v1554
        %v1567 = vunpack.c.l.b16 %v1555
        %v1568 = vunpack.c.l.b16 %v1556
        %v1569 = vpack.c.b16 %v1564, %v1563
        %v1570 = vpack.c.b16 %v1566, %v1565
        %v1571 = vpack.c.b16 %v1568, %v1567
        %vm1575 = vcmask 392192
        %v1576 = vsel %vm1575, %v1433, 0
        %v1578 = vsel %vm1575, %v1434, 0
        %v1580 = vsel %vm1575, %v1435, 0
        %v1582 = vsel %vm1575, %v1436, 0
        %v1584 = vsel %vm1575, %v1437, 0
        %v1586 = vsel %vm1575, %v1438, 0
        %v1588 = vsel %vm1575, %v1439, 0
        %v1590 = vsel %vm1575, %v1440, 0
        %1592 = vmatpush.bf16.msra.mxu0 0
        %1593 = vmatpush.bf16.msra.mxu0 0
        %1594 = vmatpush.bf16.msra.mxu0 0
        %1595 = vmatpush.bf16.msra.mxu0 0
        %1596 = vmatpush.bf16.msra.mxu0 0
        %1597 = vmatpush.bf16.msra.mxu0 %v1571
        %1598 = vmatpush.bf16.msra.mxu0 %v1570
        %1599 = vmatpush.bf16.msra.mxu0 %v1569
        %1600 = vmatmul.bf16.gmra.mxu0 %v1576
        %v1601 = vpop.f32.mrf.mxu0
        %v1602 = vadd.f32 0.0, %v1601
        %v1603 = vpop.f32.mrf.mxu0
        %v1604 = vadd.f32 0.0, %v1603
        %1605 = vmatmul.bf16.gmra.mxu0 %v1578
        %v1606 = vpop.f32.mrf.mxu0
        %v1607 = vadd.f32 0.0, %v1606
        %v1608 = vpop.f32.mrf.mxu0
        %v1609 = vadd.f32 0.0, %v1608
        %1610 = vmatmul.bf16.gmra.mxu0 %v1580
        %v1611 = vpop.f32.mrf.mxu0
        %v1612 = vadd.f32 0.0, %v1611
        %v1613 = vpop.f32.mrf.mxu0
        %v1614 = vadd.f32 0.0, %v1613
        %1615 = vmatmul.bf16.gmra.mxu0 %v1582
        %v1616 = vpop.f32.mrf.mxu0
        %v1617 = vadd.f32 0.0, %v1616
        %v1618 = vpop.f32.mrf.mxu0
        %v1619 = vadd.f32 0.0, %v1618
        %1620 = vmatmul.bf16.gmra.mxu0 %v1584
        %v1621 = vpop.f32.mrf.mxu0
        %v1622 = vadd.f32 0.0, %v1621
        %v1623 = vpop.f32.mrf.mxu0
        %v1624 = vadd.f32 0.0, %v1623
        %1625 = vmatmul.bf16.gmra.mxu0 %v1586
        %v1626 = vpop.f32.mrf.mxu0
        %v1627 = vadd.f32 0.0, %v1626
        %v1628 = vpop.f32.mrf.mxu0
        %v1629 = vadd.f32 0.0, %v1628
        %1630 = vmatmul.bf16.gmra.mxu0 %v1588
        %v1631 = vpop.f32.mrf.mxu0
        %v1632 = vadd.f32 0.0, %v1631
        %v1633 = vpop.f32.mrf.mxu0
        %v1634 = vadd.f32 0.0, %v1633
        %1635 = vmatmul.bf16.gmra.mxu0 %v1590
        %v1636 = vpop.f32.mrf.mxu0
        %v1637 = vpop.f32.mrf.mxu0
        %1638 = vdwg.mxu0
        %v1645 = vunpack.c.l.b16 %v1545
        %v1646 = vunpack.c.l.b16 %v1546
        %v1647 = vunpack.c.l.b16 %v1547
        %v1648 = vunpack.c.l.b16 %v1548
        %v1649 = vunpack.c.l.b16 %v1549
        %v1650 = vunpack.c.l.b16 %v1550
        %v1651 = vpack.c.b16 %v1646, %v1645
        %v1652 = vpack.c.b16 %v1648, %v1647
        %v1653 = vpack.c.b16 %v1650, %v1649
        %v1658 = vsel %vm1575, %v1505, 0
        %v1661 = vsel %vm1575, %v1506, 0
        %v1664 = vsel %vm1575, %v1507, 0
        %v1667 = vsel %vm1575, %v1508, 0
        %v1670 = vsel %vm1575, %v1509, 0
        %v1673 = vsel %vm1575, %v1510, 0
        %v1676 = vsel %vm1575, %v1511, 0
        %v1679 = vsel %vm1575, %v1512, 0
        %1681 = vmatpush.bf16.msra.mxu0 0
        %1682 = vmatpush.bf16.msra.mxu0 0
        %1683 = vmatpush.bf16.msra.mxu0 0
        %1684 = vmatpush.bf16.msra.mxu0 0
        %1685 = vmatpush.bf16.msra.mxu0 0
        %1686 = vmatpush.bf16.msra.mxu0 %v1653
        %1687 = vmatpush.bf16.msra.mxu0 %v1652
        %1688 = vmatpush.bf16.msra.mxu0 %v1651
        %1689 = vmatmul.bf16.gmra.mxu0 %v1658
        %v1690 = vpop.f32.mrf.mxu0
        %v1691 = vadd.f32 %v1602, %v1690
        %v1692 = vpop.f32.mrf.mxu0
        %v1693 = vadd.f32 %v1604, %v1692
        %1694 = vmatmul.bf16.gmra.mxu0 %v1661
        %v1695 = vpop.f32.mrf.mxu0
        %v1696 = vadd.f32 %v1607, %v1695
        %v1697 = vpop.f32.mrf.mxu0
        %v1698 = vadd.f32 %v1609, %v1697
        %1699 = vmatmul.bf16.gmra.mxu0 %v1664
        %v1700 = vpop.f32.mrf.mxu0
        %v1701 = vadd.f32 %v1612, %v1700
        %v1702 = vpop.f32.mrf.mxu0
        %v1703 = vadd.f32 %v1614, %v1702
        %1704 = vmatmul.bf16.gmra.mxu0 %v1667
        %v1705 = vpop.f32.mrf.mxu0
        %v1706 = vadd.f32 %v1617, %v1705
        %v1707 = vpop.f32.mrf.mxu0
        %v1708 = vadd.f32 %v1619, %v1707
        %1709 = vmatmul.bf16.gmra.mxu0 %v1670
        %v1710 = vpop.f32.mrf.mxu0
        %v1711 = vadd.f32 %v1622, %v1710
        %v1712 = vpop.f32.mrf.mxu0
        %v1713 = vadd.f32 %v1624, %v1712
        %1714 = vmatmul.bf16.gmra.mxu0 %v1673
        %v1715 = vpop.f32.mrf.mxu0
        %v1716 = vadd.f32 %v1627, %v1715
        %v1717 = vpop.f32.mrf.mxu0
        %v1718 = vadd.f32 %v1629, %v1717
        %1719 = vmatmul.bf16.gmra.mxu0 %v1676
        %v1720 = vpop.f32.mrf.mxu0
        %v1721 = vadd.f32 %v1632, %v1720
        %v1722 = vpop.f32.mrf.mxu0
        %v1723 = vadd.f32 %v1634, %v1722
        %1724 = vmatmul.bf16.gmra.mxu0 %v1679
        %v1725 = vpop.f32.mrf.mxu0
        %v1726 = vpop.f32.mrf.mxu0
        %1727 = vdwg.mxu0
        %v1728 = vld [vmem:[%s3 + $0x30] sm:$0xf]
        %v1729 = vld [vmem:[%s3 + $0x34] sm:$0xf]
        %v1730 = vld [vmem:[%s3 + $0x38] sm:$0xf]
        %v1731 = vld [vmem:[%s3 + $0x3c] sm:$0xf]
        %v1732 = vld [vmem:[%s3 + $0x40] sm:$0xf]
        %v1733 = vld [vmem:[%s3 + $0x44] sm:$0xf]
        %v1740 = vunpack.c.l.b16 %v1728
        %v1741 = vunpack.c.l.b16 %v1729
        %v1742 = vunpack.c.l.b16 %v1730
        %v1743 = vunpack.c.l.b16 %v1731
        %v1744 = vunpack.c.l.b16 %v1732
        %v1745 = vunpack.c.l.b16 %v1733
        %v1746 = vpack.c.b16 %v1741, %v1740
        %v1747 = vpack.c.b16 %v1743, %v1742
        %v1748 = vpack.c.b16 %v1745, %v1744
        %v1753 = vsel %vm1575, %v1537, 0
        %v1756 = vsel %vm1575, %v1538, 0
        %v1759 = vsel %vm1575, %v1539, 0
        %v1762 = vsel %vm1575, %v1540, 0
        %v1765 = vsel %vm1575, %v1541, 0
        %v1768 = vsel %vm1575, %v1542, 0
        %v1771 = vsel %vm1575, %v1543, 0
        %v1774 = vsel %vm1575, %v1544, 0
        %1776 = vmatpush.bf16.msra.mxu0 0
        %1777 = vmatpush.bf16.msra.mxu0 0
        %1778 = vmatpush.bf16.msra.mxu0 0
        %1779 = vmatpush.bf16.msra.mxu0 0
        %1780 = vmatpush.bf16.msra.mxu0 0
        %1781 = vmatpush.bf16.msra.mxu0 %v1748
        %1782 = vmatpush.bf16.msra.mxu0 %v1747
        %1783 = vmatpush.bf16.msra.mxu0 %v1746
        %1784 = vmatmul.bf16.gmra.mxu0 %v1753
        %v1785 = vpop.f32.mrf.mxu0
        %v1786 = vadd.f32 0.0, %v1785
        %v1787 = vpop.f32.mrf.mxu0
        %v1788 = vadd.f32 0.0, %v1787
        %1789 = vmatmul.bf16.gmra.mxu0 %v1756
        %v1790 = vpop.f32.mrf.mxu0
        %v1791 = vadd.f32 0.0, %v1790
        %v1792 = vpop.f32.mrf.mxu0
        %v1793 = vadd.f32 0.0, %v1792
        %1794 = vmatmul.bf16.gmra.mxu0 %v1759
        %v1795 = vpop.f32.mrf.mxu0
        %v1796 = vadd.f32 0.0, %v1795
        %v1797 = vpop.f32.mrf.mxu0
        %v1798 = vadd.f32 0.0, %v1797
        %1799 = vmatmul.bf16.gmra.mxu0 %v1762
        %v1800 = vpop.f32.mrf.mxu0
        %v1801 = vadd.f32 0.0, %v1800
        %v1802 = vpop.f32.mrf.mxu0
        %v1803 = vadd.f32 0.0, %v1802
        %1804 = vmatmul.bf16.gmra.mxu0 %v1765
        %v1805 = vpop.f32.mrf.mxu0
        %v1806 = vadd.f32 0.0, %v1805
        %v1807 = vpop.f32.mrf.mxu0
        %v1808 = vadd.f32 0.0, %v1807
        %1809 = vmatmul.bf16.gmra.mxu0 %v1768
        %v1810 = vpop.f32.mrf.mxu0
        %v1811 = vadd.f32 0.0, %v1810
        %v1812 = vpop.f32.mrf.mxu0
        %v1813 = vadd.f32 0.0, %v1812
        %1814 = vmatmul.bf16.gmra.mxu0 %v1771
        %v1815 = vpop.f32.mrf.mxu0
        %v1816 = vadd.f32 0.0, %v1815
        %v1817 = vpop.f32.mrf.mxu0
        %v1818 = vadd.f32 0.0, %v1817
        %1819 = vmatmul.bf16.gmra.mxu0 %v1774
        %v1820 = vpop.f32.mrf.mxu0
        %v1821 = vpop.f32.mrf.mxu0
        %1822 = vdwg.mxu0
        %v1823 = vadd.f32 %v1691, %v1786
        %v1824 = vadd.f32 %v1693, %v1788
        %v1825 = vadd.f32 %v1696, %v1791
        %v1826 = vadd.f32 %v1698, %v1793
        %v1827 = vadd.f32 %v1701, %v1796
        %v1828 = vadd.f32 %v1703, %v1798
        %v1829 = vadd.f32 %v1706, %v1801
        %v1830 = vadd.f32 %v1708, %v1803
        %v1831 = vadd.f32 %v1711, %v1806
        %v1832 = vadd.f32 %v1713, %v1808
        %v1833 = vadd.f32 %v1716, %v1811
        %v1834 = vadd.f32 %v1718, %v1813
        %v1835 = vadd.f32 %v1721, %v1816
        %v1836 = vadd.f32 %v1723, %v1818
        %v1837 = vld [vmem:[%s3 + $0x48] sm:$0xf]
        %v1838 = vld [vmem:[%s3 + $0x4c] sm:$0xf]
        %v1839 = vld [vmem:[%s3 + $0x50] sm:$0xf]
        %v1840 = vld [vmem:[%s3 + $0x54] sm:$0xf]
        %v1841 = vld [vmem:[%s3 + $0x58] sm:$0xf]
        %v1842 = vld [vmem:[%s3 + $0x5c] sm:$0xf]
        %v1843 = vld [vmem:[%s3 + $0x60] sm:$0xf]
        %v1844 = vld [vmem:[%s3 + $0x64] sm:$0xf]
        %v1845 = vld [vmem:[%s3 + $0x68] sm:$0xf]
        %v1846 = vld [vmem:[%s3 + $0x6c] sm:$0xf]
        %v1847 = vld [vmem:[%s3 + $0x70] sm:$0xf]
        %v1848 = vld [vmem:[%s3 + $0x74] sm:$0xf]
        %v1855 = vunpack.c.l.b16 %v1843
        %v1856 = vunpack.c.l.b16 %v1844
        %v1857 = vunpack.c.l.b16 %v1845
        %v1858 = vunpack.c.l.b16 %v1846
        %v1859 = vunpack.c.l.b16 %v1847
        %v1860 = vunpack.c.l.b16 %v1848
        %v1861 = vpack.c.b16 %v1856, %v1855
        %v1862 = vpack.c.b16 %v1858, %v1857
        %v1863 = vpack.c.b16 %v1860, %v1859
        %1867 = vmatpush.bf16.msra.mxu0 0
        %1868 = vmatpush.bf16.msra.mxu0 0
        %1869 = vmatpush.bf16.msra.mxu0 0
        %1870 = vmatpush.bf16.msra.mxu0 0
        %1871 = vmatpush.bf16.msra.mxu0 0
        %1872 = vmatpush.bf16.msra.mxu0 %v1863
        %1873 = vmatpush.bf16.msra.mxu0 %v1862
        %1874 = vmatpush.bf16.msra.mxu0 %v1861
        %1875 = vmatmul.bf16.gmra.mxu0 %v1576
        %v1876 = vpop.f32.mrf.mxu0
        %v1877 = vadd.f32 0.0, %v1876
        %v1878 = vpop.f32.mrf.mxu0
        %v1879 = vadd.f32 0.0, %v1878
        %1880 = vmatmul.bf16.gmra.mxu0 %v1578
        %v1881 = vpop.f32.mrf.mxu0
        %v1882 = vadd.f32 0.0, %v1881
        %v1883 = vpop.f32.mrf.mxu0
        %v1884 = vadd.f32 0.0, %v1883
        %1885 = vmatmul.bf16.gmra.mxu0 %v1580
        %v1886 = vpop.f32.mrf.mxu0
        %v1887 = vadd.f32 0.0, %v1886
        %v1888 = vpop.f32.mrf.mxu0
        %v1889 = vadd.f32 0.0, %v1888
        %1890 = vmatmul.bf16.gmra.mxu0 %v1582
        %v1891 = vpop.f32.mrf.mxu0
        %v1892 = vadd.f32 0.0, %v1891
        %v1893 = vpop.f32.mrf.mxu0
        %v1894 = vadd.f32 0.0, %v1893
        %1895 = vmatmul.bf16.gmra.mxu0 %v1584
        %v1896 = vpop.f32.mrf.mxu0
        %v1897 = vadd.f32 0.0, %v1896
        %v1898 = vpop.f32.mrf.mxu0
        %v1899 = vadd.f32 0.0, %v1898
        %1900 = vmatmul.bf16.gmra.mxu0 %v1586
        %v1901 = vpop.f32.mrf.mxu0
        %v1902 = vadd.f32 0.0, %v1901
        %v1903 = vpop.f32.mrf.mxu0
        %v1904 = vadd.f32 0.0, %v1903
        %1905 = vmatmul.bf16.gmra.mxu0 %v1588
        %v1906 = vpop.f32.mrf.mxu0
        %v1907 = vadd.f32 0.0, %v1906
        %v1908 = vpop.f32.mrf.mxu0
        %v1909 = vadd.f32 0.0, %v1908
        %1910 = vmatmul.bf16.gmra.mxu0 %v1590
        %v1911 = vpop.f32.mrf.mxu0
        %v1912 = vadd.f32 0.0, %v1911
        %v1913 = vpop.f32.mrf.mxu0
        %v1914 = vadd.f32 0.0, %v1913
        %1915 = vdwg.mxu0
        %v1922 = vunpack.c.l.b16 %v1837
        %v1923 = vunpack.c.l.b16 %v1838
        %v1924 = vunpack.c.l.b16 %v1839
        %v1925 = vunpack.c.l.b16 %v1840
        %v1926 = vunpack.c.l.b16 %v1841
        %v1927 = vunpack.c.l.b16 %v1842
        %v1928 = vpack.c.b16 %v1923, %v1922
        %v1929 = vpack.c.b16 %v1925, %v1924
        %v1930 = vpack.c.b16 %v1927, %v1926
        %1934 = vmatpush.bf16.msra.mxu0 0
        %1935 = vmatpush.bf16.msra.mxu0 0
        %1936 = vmatpush.bf16.msra.mxu0 0
        %1937 = vmatpush.bf16.msra.mxu0 0
        %1938 = vmatpush.bf16.msra.mxu0 0
        %1939 = vmatpush.bf16.msra.mxu0 %v1930
        %1940 = vmatpush.bf16.msra.mxu0 %v1929
        %1941 = vmatpush.bf16.msra.mxu0 %v1928
        %1942 = vmatmul.bf16.gmra.mxu0 %v1658
        %v1943 = vpop.f32.mrf.mxu0
        %v1944 = vadd.f32 %v1877, %v1943
        %v1945 = vpop.f32.mrf.mxu0
        %v1946 = vadd.f32 %v1879, %v1945
        %1947 = vmatmul.bf16.gmra.mxu0 %v1661
        %v1948 = vpop.f32.mrf.mxu0
        %v1949 = vadd.f32 %v1882, %v1948
        %v1950 = vpop.f32.mrf.mxu0
        %v1951 = vadd.f32 %v1884, %v1950
        %1952 = vmatmul.bf16.gmra.mxu0 %v1664
        %v1953 = vpop.f32.mrf.mxu0
        %v1954 = vadd.f32 %v1887, %v1953
        %v1955 = vpop.f32.mrf.mxu0
        %v1956 = vadd.f32 %v1889, %v1955
        %1957 = vmatmul.bf16.gmra.mxu0 %v1667
        %v1958 = vpop.f32.mrf.mxu0
        %v1959 = vadd.f32 %v1892, %v1958
        %v1960 = vpop.f32.mrf.mxu0
        %v1961 = vadd.f32 %v1894, %v1960
        %1962 = vmatmul.bf16.gmra.mxu0 %v1670
        %v1963 = vpop.f32.mrf.mxu0
        %v1964 = vadd.f32 %v1897, %v1963
        %v1965 = vpop.f32.mrf.mxu0
        %v1966 = vadd.f32 %v1899, %v1965
        %1967 = vmatmul.bf16.gmra.mxu0 %v1673
        %v1968 = vpop.f32.mrf.mxu0
        %v1969 = vadd.f32 %v1902, %v1968
        %v1970 = vpop.f32.mrf.mxu0
        %v1971 = vadd.f32 %v1904, %v1970
        %1972 = vmatmul.bf16.gmra.mxu0 %v1676
        %v1973 = vpop.f32.mrf.mxu0
        %v1974 = vadd.f32 %v1907, %v1973
        %v1975 = vpop.f32.mrf.mxu0
        %v1976 = vadd.f32 %v1909, %v1975
        %1977 = vmatmul.bf16.gmra.mxu0 %v1679
        %v1978 = vpop.f32.mrf.mxu0
        %v1979 = vadd.f32 %v1912, %v1978
        %v1980 = vpop.f32.mrf.mxu0
        %v1981 = vadd.f32 %v1914, %v1980
        %1982 = vdwg.mxu0
        %v1983 = vld [vmem:[%s3 + $0x78] sm:$0xf]
        %v1984 = vld [vmem:[%s3 + $0x7c] sm:$0xf]
        %v1985 = vld [vmem:[%s3 + $0x80] sm:$0xf]
        %v1986 = vld [vmem:[%s3 + $0x84] sm:$0xf]
        %v1987 = vld [vmem:[%s3 + $0x88] sm:$0xf]
        %v1988 = vld [vmem:[%s3 + $0x8c] sm:$0xf]
        %v1995 = vunpack.c.l.b16 %v1983
        %v1996 = vunpack.c.l.b16 %v1984
        %v1997 = vunpack.c.l.b16 %v1985
        %v1998 = vunpack.c.l.b16 %v1986
        %v1999 = vunpack.c.l.b16 %v1987
        %v2000 = vunpack.c.l.b16 %v1988
        %v2001 = vpack.c.b16 %v1996, %v1995
        %v2002 = vpack.c.b16 %v1998, %v1997
        %v2003 = vpack.c.b16 %v2000, %v1999
        %2007 = vmatpush.bf16.msra.mxu0 0
        %2008 = vmatpush.bf16.msra.mxu0 0
        %2009 = vmatpush.bf16.msra.mxu0 0
        %2010 = vmatpush.bf16.msra.mxu0 0
        %2011 = vmatpush.bf16.msra.mxu0 0
        %2012 = vmatpush.bf16.msra.mxu0 %v2003
        %2013 = vmatpush.bf16.msra.mxu0 %v2002
        %2014 = vmatpush.bf16.msra.mxu0 %v2001
        %2015 = vmatmul.bf16.gmra.mxu0 %v1753
        %v2016 = vpop.f32.mrf.mxu0
        %v2017 = vadd.f32 0.0, %v2016
        %v2018 = vpop.f32.mrf.mxu0
        %v2019 = vadd.f32 0.0, %v2018
        %2020 = vmatmul.bf16.gmra.mxu0 %v1756
        %v2021 = vpop.f32.mrf.mxu0
        %v2022 = vadd.f32 0.0, %v2021
        %v2023 = vpop.f32.mrf.mxu0
        %v2024 = vadd.f32 0.0, %v2023
        %2025 = vmatmul.bf16.gmra.mxu0 %v1759
        %v2026 = vpop.f32.mrf.mxu0
        %v2027 = vadd.f32 0.0, %v2026
        %v2028 = vpop.f32.mrf.mxu0
        %v2029 = vadd.f32 0.0, %v2028
        %2030 = vmatmul.bf16.gmra.mxu0 %v1762
        %v2031 = vpop.f32.mrf.mxu0
        %v2032 = vadd.f32 0.0, %v2031
        %v2033 = vpop.f32.mrf.mxu0
        %v2034 = vadd.f32 0.0, %v2033
        %2035 = vmatmul.bf16.gmra.mxu0 %v1765
        %v2036 = vpop.f32.mrf.mxu0
        %v2037 = vadd.f32 0.0, %v2036
        %v2038 = vpop.f32.mrf.mxu0
        %v2039 = vadd.f32 0.0, %v2038
        %2040 = vmatmul.bf16.gmra.mxu0 %v1768
        %v2041 = vpop.f32.mrf.mxu0
        %v2042 = vadd.f32 0.0, %v2041
        %v2043 = vpop.f32.mrf.mxu0
        %v2044 = vadd.f32 0.0, %v2043
        %2045 = vmatmul.bf16.gmra.mxu0 %v1771
        %v2046 = vpop.f32.mrf.mxu0
        %v2047 = vadd.f32 0.0, %v2046
        %v2048 = vpop.f32.mrf.mxu0
        %v2049 = vadd.f32 0.0, %v2048
        %2050 = vmatmul.bf16.gmra.mxu0 %v1774
        %v2051 = vpop.f32.mrf.mxu0
        %v2052 = vadd.f32 0.0, %v2051
        %v2053 = vpop.f32.mrf.mxu0
        %v2054 = vadd.f32 0.0, %v2053
        %2055 = vdwg.mxu0
        %v2056 = vadd.f32 %v1944, %v2017
        %v2057 = vadd.f32 %v1946, %v2019
        %v2058 = vadd.f32 %v1949, %v2022
        %v2059 = vadd.f32 %v1951, %v2024
        %v2060 = vadd.f32 %v1954, %v2027
        %v2061 = vadd.f32 %v1956, %v2029
        %v2062 = vadd.f32 %v1959, %v2032
        %v2063 = vadd.f32 %v1961, %v2034
        %v2064 = vadd.f32 %v1964, %v2037
        %v2065 = vadd.f32 %v1966, %v2039
        %v2066 = vadd.f32 %v1969, %v2042
        %v2067 = vadd.f32 %v1971, %v2044
        %v2068 = vadd.f32 %v1974, %v2047
        %v2069 = vadd.f32 %v1976, %v2049
        %v2070 = vadd.f32 %v1979, %v2052
        %v2071 = vadd.f32 %v1981, %v2054
        %v2072 = vld [vmem:[%s3 + $0x90] sm:$0xf]
        %v2073 = vld [vmem:[%s3 + $0x94] sm:$0xf]
        %v2074 = vld [vmem:[%s3 + $0x98] sm:$0xf]
        %v2075 = vld [vmem:[%s3 + $0x9c] sm:$0xf]
        %v2076 = vld [vmem:[%s3 + $0xa0] sm:$0xf]
        %v2077 = vld [vmem:[%s3 + $0xa4] sm:$0xf]
        %v2078 = vld [vmem:[%s3 + $0xa8] sm:$0xf]
        %v2079 = vld [vmem:[%s3 + $0xac] sm:$0xf]
        %v2080 = vld [vmem:[%s3 + $0xb0] sm:$0xf]
        %v2081 = vld [vmem:[%s3 + $0xb4] sm:$0xf]
        %v2082 = vld [vmem:[%s3 + $0xb8] sm:$0xf]
        %v2083 = vld [vmem:[%s3 + $0xbc] sm:$0xf]
        %v2090 = vunpack.c.l.b16 %v2078
        %v2091 = vunpack.c.l.b16 %v2079
        %v2092 = vunpack.c.l.b16 %v2080
        %v2093 = vunpack.c.l.b16 %v2081
        %v2094 = vunpack.c.l.b16 %v2082
        %v2095 = vunpack.c.l.b16 %v2083
        %v2096 = vpack.c.b16 %v2091, %v2090
        %v2097 = vpack.c.b16 %v2093, %v2092
        %v2098 = vpack.c.b16 %v2095, %v2094
        %2102 = vmatpush.bf16.msra.mxu0 0
        %2103 = vmatpush.bf16.msra.mxu0 0
        %2104 = vmatpush.bf16.msra.mxu0 0
        %2105 = vmatpush.bf16.msra.mxu0 0
        %2106 = vmatpush.bf16.msra.mxu0 0
        %2107 = vmatpush.bf16.msra.mxu0 %v2098
        %2108 = vmatpush.bf16.msra.mxu0 %v2097
        %2109 = vmatpush.bf16.msra.mxu0 %v2096
        %2110 = vmatmul.bf16.gmra.mxu0 %v1576
        %v2111 = vpop.f32.mrf.mxu0
        %v2112 = vpop.f32.mrf.mxu0
        %2113 = vmatmul.bf16.gmra.mxu0 %v1578
        %v2114 = vpop.f32.mrf.mxu0
        %v2115 = vadd.f32 0.0, %v2114
        %v2116 = vpop.f32.mrf.mxu0
        %v2117 = vadd.f32 0.0, %v2116
        %2118 = vmatmul.bf16.gmra.mxu0 %v1580
        %v2119 = vpop.f32.mrf.mxu0
        %v2120 = vadd.f32 0.0, %v2119
        %v2121 = vpop.f32.mrf.mxu0
        %v2122 = vadd.f32 0.0, %v2121
        %2123 = vmatmul.bf16.gmra.mxu0 %v1582
        %v2124 = vpop.f32.mrf.mxu0
        %v2125 = vadd.f32 0.0, %v2124
        %v2126 = vpop.f32.mrf.mxu0
        %v2127 = vadd.f32 0.0, %v2126
        %2128 = vmatmul.bf16.gmra.mxu0 %v1584
        %v2129 = vpop.f32.mrf.mxu0
        %v2130 = vadd.f32 0.0, %v2129
        %v2131 = vpop.f32.mrf.mxu0
        %v2132 = vadd.f32 0.0, %v2131
        %2133 = vmatmul.bf16.gmra.mxu0 %v1586
        %v2134 = vpop.f32.mrf.mxu0
        %v2135 = vadd.f32 0.0, %v2134
        %v2136 = vpop.f32.mrf.mxu0
        %v2137 = vadd.f32 0.0, %v2136
        %2138 = vmatmul.bf16.gmra.mxu0 %v1588
        %v2139 = vpop.f32.mrf.mxu0
        %v2140 = vadd.f32 0.0, %v2139
        %v2141 = vpop.f32.mrf.mxu0
        %v2142 = vadd.f32 0.0, %v2141
        %2143 = vmatmul.bf16.gmra.mxu0 %v1590
        %v2144 = vpop.f32.mrf.mxu0
        %v2145 = vadd.f32 0.0, %v2144
        %v2146 = vpop.f32.mrf.mxu0
        %v2147 = vadd.f32 0.0, %v2146
        %2148 = vdwg.mxu0
        %v2155 = vunpack.c.l.b16 %v2072
        %v2156 = vunpack.c.l.b16 %v2073
        %v2157 = vunpack.c.l.b16 %v2074
        %v2158 = vunpack.c.l.b16 %v2075
        %v2159 = vunpack.c.l.b16 %v2076
        %v2160 = vunpack.c.l.b16 %v2077
        %v2161 = vpack.c.b16 %v2156, %v2155
        %v2162 = vpack.c.b16 %v2158, %v2157
        %v2163 = vpack.c.b16 %v2160, %v2159
        %2167 = vmatpush.bf16.msra.mxu0 0
        %2168 = vmatpush.bf16.msra.mxu0 0
        %2169 = vmatpush.bf16.msra.mxu0 0
        %2170 = vmatpush.bf16.msra.mxu0 0
        %2171 = vmatpush.bf16.msra.mxu0 0
        %2172 = vmatpush.bf16.msra.mxu0 %v2163
        %2173 = vmatpush.bf16.msra.mxu0 %v2162
        %2174 = vmatpush.bf16.msra.mxu0 %v2161
        %2175 = vmatmul.bf16.gmra.mxu0 %v1658
        %v2176 = vpop.f32.mrf.mxu0
        %v2177 = vpop.f32.mrf.mxu0
        %2178 = vmatmul.bf16.gmra.mxu0 %v1661
        %v2179 = vpop.f32.mrf.mxu0
        %v2180 = vadd.f32 %v2115, %v2179
        %v2181 = vpop.f32.mrf.mxu0
        %v2182 = vadd.f32 %v2117, %v2181
        %2183 = vmatmul.bf16.gmra.mxu0 %v1664
        %v2184 = vpop.f32.mrf.mxu0
        %v2185 = vadd.f32 %v2120, %v2184
        %v2186 = vpop.f32.mrf.mxu0
        %v2187 = vadd.f32 %v2122, %v2186
        %2188 = vmatmul.bf16.gmra.mxu0 %v1667
        %v2189 = vpop.f32.mrf.mxu0
        %v2190 = vadd.f32 %v2125, %v2189
        %v2191 = vpop.f32.mrf.mxu0
        %v2192 = vadd.f32 %v2127, %v2191
        %2193 = vmatmul.bf16.gmra.mxu0 %v1670
        %v2194 = vpop.f32.mrf.mxu0
        %v2195 = vadd.f32 %v2130, %v2194
        %v2196 = vpop.f32.mrf.mxu0
        %v2197 = vadd.f32 %v2132, %v2196
        %2198 = vmatmul.bf16.gmra.mxu0 %v1673
        %v2199 = vpop.f32.mrf.mxu0
        %v2200 = vadd.f32 %v2135, %v2199
        %v2201 = vpop.f32.mrf.mxu0
        %v2202 = vadd.f32 %v2137, %v2201
        %2203 = vmatmul.bf16.gmra.mxu0 %v1676
        %v2204 = vpop.f32.mrf.mxu0
        %v2205 = vadd.f32 %v2140, %v2204
        %v2206 = vpop.f32.mrf.mxu0
        %v2207 = vadd.f32 %v2142, %v2206
        %2208 = vmatmul.bf16.gmra.mxu0 %v1679
        %v2209 = vpop.f32.mrf.mxu0
        %v2210 = vadd.f32 %v2145, %v2209
        %v2211 = vpop.f32.mrf.mxu0
        %v2212 = vadd.f32 %v2147, %v2211
        %2213 = vdwg.mxu0
        %v2214 = vld [vmem:[%s3 + $0xc0] sm:$0xf]
        %v2215 = vld [vmem:[%s3 + $0xc4] sm:$0xf]
        %v2216 = vld [vmem:[%s3 + $0xc8] sm:$0xf]
        %v2217 = vld [vmem:[%s3 + $0xcc] sm:$0xf]
        %v2218 = vld [vmem:[%s3 + $0xd0] sm:$0xf]
        %v2219 = vld [vmem:[%s3 + $0xd4] sm:$0xf]
        %v2226 = vunpack.c.l.b16 %v2214
        %v2227 = vunpack.c.l.b16 %v2215
        %v2228 = vunpack.c.l.b16 %v2216
        %v2229 = vunpack.c.l.b16 %v2217
        %v2230 = vunpack.c.l.b16 %v2218
        %v2231 = vunpack.c.l.b16 %v2219
        %v2232 = vpack.c.b16 %v2227, %v2226
        %v2233 = vpack.c.b16 %v2229, %v2228
        %v2234 = vpack.c.b16 %v2231, %v2230
        %2238 = vmatpush.bf16.msra.mxu0 0
        %2239 = vmatpush.bf16.msra.mxu0 0
        %2240 = vmatpush.bf16.msra.mxu0 0
        %2241 = vmatpush.bf16.msra.mxu0 0
        %2242 = vmatpush.bf16.msra.mxu0 0
        %2243 = vmatpush.bf16.msra.mxu0 %v2234
        %2244 = vmatpush.bf16.msra.mxu0 %v2233
        %2245 = vmatpush.bf16.msra.mxu0 %v2232
        %2246 = vmatmul.bf16.gmra.mxu0 %v1753
        %v2247 = vpop.f32.mrf.mxu0
        %v2248 = vpop.f32.mrf.mxu0
        %2249 = vmatmul.bf16.gmra.mxu0 %v1756
        %v2250 = vpop.f32.mrf.mxu0
        %v2251 = vadd.f32 0.0, %v2250
        %v2252 = vpop.f32.mrf.mxu0
        %v2253 = vadd.f32 0.0, %v2252
        %2254 = vmatmul.bf16.gmra.mxu0 %v1759
        %v2255 = vpop.f32.mrf.mxu0
        %v2256 = vadd.f32 0.0, %v2255
        %v2257 = vpop.f32.mrf.mxu0
        %v2258 = vadd.f32 0.0, %v2257
        %2259 = vmatmul.bf16.gmra.mxu0 %v1762
        %v2260 = vpop.f32.mrf.mxu0
        %v2261 = vadd.f32 0.0, %v2260
        %v2262 = vpop.f32.mrf.mxu0
        %v2263 = vadd.f32 0.0, %v2262
        %2264 = vmatmul.bf16.gmra.mxu0 %v1765
        %v2265 = vpop.f32.mrf.mxu0
        %v2266 = vadd.f32 0.0, %v2265
        %v2267 = vpop.f32.mrf.mxu0
        %v2268 = vadd.f32 0.0, %v2267
        %2269 = vmatmul.bf16.gmra.mxu0 %v1768
        %v2270 = vpop.f32.mrf.mxu0
        %v2271 = vadd.f32 0.0, %v2270
        %v2272 = vpop.f32.mrf.mxu0
        %v2273 = vadd.f32 0.0, %v2272
        %2274 = vmatmul.bf16.gmra.mxu0 %v1771
        %v2275 = vpop.f32.mrf.mxu0
        %v2276 = vadd.f32 0.0, %v2275
        %v2277 = vpop.f32.mrf.mxu0
        %v2278 = vadd.f32 0.0, %v2277
        %2279 = vmatmul.bf16.gmra.mxu0 %v1774
        %v2280 = vpop.f32.mrf.mxu0
        %v2281 = vadd.f32 0.0, %v2280
        %v2282 = vpop.f32.mrf.mxu0
        %v2283 = vadd.f32 0.0, %v2282
        %2284 = vdwg.mxu0
        %v2285 = vadd.f32 %v2180, %v2251
        %v2286 = vadd.f32 %v2182, %v2253
        %v2287 = vadd.f32 %v2185, %v2256
        %v2288 = vadd.f32 %v2187, %v2258
        %v2289 = vadd.f32 %v2190, %v2261
        %v2290 = vadd.f32 %v2192, %v2263
        %v2291 = vadd.f32 %v2195, %v2266
        %v2292 = vadd.f32 %v2197, %v2268
        %v2293 = vadd.f32 %v2200, %v2271
        %v2294 = vadd.f32 %v2202, %v2273
        %v2295 = vadd.f32 %v2205, %v2276
        %v2296 = vadd.f32 %v2207, %v2278
        %v2297 = vadd.f32 %v2210, %v2281
        %v2298 = vadd.f32 %v2212, %v2283
        %v2299 = vadd.f32 %v2056, 0.0
        %v2300 = vadd.f32 %v2057, 0.0
        %v2301 = vadd.f32 %v2058, %v1823
        %v2302 = vadd.f32 %v2059, %v1824
        %v2303 = vadd.f32 %v2060, %v1825
        %v2304 = vadd.f32 %v2061, %v1826
        %v2305 = vadd.f32 %v2062, %v1827
        %v2306 = vadd.f32 %v2063, %v1828
        %v2307 = vadd.f32 %v2064, %v1829
        %v2308 = vadd.f32 %v2065, %v1830
        %v2309 = vadd.f32 %v2066, %v1831
        %v2310 = vadd.f32 %v2067, %v1832
        %v2311 = vadd.f32 %v2068, %v1833
        %v2312 = vadd.f32 %v2069, %v1834
        %v2313 = vadd.f32 %v2070, %v1835
        %v2314 = vadd.f32 %v2071, %v1836
        %v2315 = vadd.f32 %v2299, %v2285
        %v2316 = vadd.f32 %v2300, %v2286
        %v2317 = vadd.f32 %v2301, %v2287
        %v2318 = vadd.f32 %v2302, %v2288
        %v2319 = vadd.f32 %v2303, %v2289
        %v2320 = vadd.f32 %v2304, %v2290
        %v2321 = vadd.f32 %v2305, %v2291
        %v2322 = vadd.f32 %v2306, %v2292
        %v2323 = vadd.f32 %v2307, %v2293
        %v2324 = vadd.f32 %v2308, %v2294
        %v2325 = vadd.f32 %v2309, %v2295
        %v2326 = vadd.f32 %v2310, %v2296
        %v2327 = vadd.f32 %v2311, %v2297
        %v2328 = vadd.f32 %v2312, %v2298
        %v2329 = vadd.f32 %v2313, 0.0
        %v2330 = vadd.f32 %v2314, 0.0
        %v2331 = vld [vmem:[#allocation6] sm:$0x1]
        %v2333 = vperm.slane %v2331, 0
        %v2335 = vadd.f32 %v2315, %v2333
        %v2336 = vadd.f32 %v2316, %v2333
        %v2337 = vadd.f32 %v2317, %v2333
        %v2338 = vadd.f32 %v2318, %v2333
        %v2339 = vadd.f32 %v2319, %v2333
        %v2340 = vadd.f32 %v2320, %v2333
        %v2341 = vadd.f32 %v2321, %v2333
        %v2342 = vadd.f32 %v2322, %v2333
        %v2343 = vadd.f32 %v2323, %v2333
        %v2344 = vadd.f32 %v2324, %v2333
        %v2345 = vadd.f32 %v2325, %v2333
        %v2346 = vadd.f32 %v2326, %v2333
        %v2347 = vadd.f32 %v2327, %v2333
        %v2348 = vadd.f32 %v2328, %v2333
        %v2349 = vadd.f32 %v2329, %v2333
        %v2350 = vadd.f32 %v2330, %v2333
        %2351 = vst.msk [vmem:[%s275] sm:$0xff] %vm1575, %v2335
        %2352 = vst.msk [vmem:[%s275 + $0x8] sm:$0xff] %vm1575, %v2336
        %2353 = vst.msk [vmem:[%s275 + $0x10] sm:$0xff] %vm1575, %v2337
        %2354 = vst.msk [vmem:[%s275 + $0x18] sm:$0xff] %vm1575, %v2338
        %2355 = vst.msk [vmem:[%s275 + $0x20] sm:$0xff] %vm1575, %v2339
        %2356 = vst.msk [vmem:[%s275 + $0x28] sm:$0xff] %vm1575, %v2340
        %2357 = vst.msk [vmem:[%s275 + $0x30] sm:$0xff] %vm1575, %v2341
        %2358 = vst.msk [vmem:[%s275 + $0x38] sm:$0xff] %vm1575, %v2342
        %2359 = vst.msk [vmem:[%s275 + $0x40] sm:$0xff] %vm1575, %v2343
        %2360 = vst.msk [vmem:[%s275 + $0x48] sm:$0xff] %vm1575, %v2344
        %2361 = vst.msk [vmem:[%s275 + $0x50] sm:$0xff] %vm1575, %v2345
        %2362 = vst.msk [vmem:[%s275 + $0x58] sm:$0xff] %vm1575, %v2346
        %2363 = vst.msk [vmem:[%s275 + $0x60] sm:$0xff] %vm1575, %v2347
        %2364 = vst.msk [vmem:[%s275 + $0x68] sm:$0xff] %vm1575, %v2348
        %2365 = vst.msk [vmem:[%s275 + $0x70] sm:$0xff] %vm1575, %v2349
        %2366 = vst.msk [vmem:[%s275 + $0x78] sm:$0xff] %vm1575, %v2350
        %p2367 = scmp.lt.s32.totalorder %s20, 1
        %s2368 = scalar_select %p2367, %s20, 1
        %s2369 = smul.addr %s2368, 16
        %s2370 = smul.addr %s2369, 8
        %s2371 = scalar_lea.vmem %s5, %s2370
        // Predicated region
        $region53: #{upscale_forward.1} parent=39 // pred_check
          %p2372 = pneg %p148
        $region54: #{upscale_forward.1} parent=39 // pred_check_branch
          %2374 = sbr.rel (%p2372) target = $region56
        $region55: #{upscale_forward.1} parent=39 // pred_region
          _
        $region56: #{upscale_forward.1} parent=39 // pred_fallthru
          _
      $region40: #{upscale_forward.1} parent=5 // pred_fallthru
        _
      %p2375 = scmp.le.s32.totalorder 2, %s15
      // Predicated region
      $region57: #{upscale_forward.1} parent=5 // pred_check
        %p2376 = pneg %p2375
      $region58: #{upscale_forward.1} parent=5 // pred_check_branch
        %2378 = sbr.rel (%p2376) target = $region60
      $region59: #{upscale_forward.1} parent=5 // pred_region
        %s2379 = ssub.s32 %s15, 2
        // Predicated region
        $region61: #{upscale_forward.1} parent=59 // pred_check
          %p2380 = pneg %p154
        $region62: #{upscale_forward.1} parent=59 // pred_check_branch
          %2382 = sbr.rel (%p2380) target = $region64
        $region63: #{upscale_forward.1} parent=59 // pred_region
          %p2383 = scmp.lt.s32.totalorder %s21, 1
          %s2384 = scalar_select %p2383, %s21, 1
          %s2385 = smul.addr %s2384, 16
          %s2386 = smul.addr %s2385, 8
          %s2387 = scalar_lea.vmem %s5, %s2386
        $region64: #{upscale_forward.1} parent=59 // pred_fallthru
          _
      $region60: #{upscale_forward.1} parent=5 // pred_fallthru
        _
    $region6: #{upscale_forward.1} parent=1 // loop_footer
      %s19 = sadd.s32 1, %s15
    $region7: #{upscale_forward.1} parent=1 // loop_footer_branch
      %14 = sbr.rel target = $region3
    $region8: #{upscale_forward.1} parent=1 // loop_exit
      _
    %2388 = vsyncpa [#allocation3], 1
    %s2389 = scalar_lea.sflag [#allocation3], 1
    %2390 = vsyncpa %s2389, 1
    %2391 = vsyncpa [#allocation5], 1

</llo_original>
